<compile_context>
chip_gen: v7x
topology: tpu7x:2x2x1
jax: 0.10.0
libtpu: 0.0.40
codegen_flags: <defaults>
</compile_context>

<pallas_src>
import numpy as np
import jax
import jax.numpy as jnp
from jax.experimental import pallas as pl
from jax.experimental.pallas import tpu as pltpu

EPS = 1e-5


def _round_up(x, m):
    return ((x + m - 1) // m) * m


# ---------------------------------------------------------------------------
# Fused kernel
# ---------------------------------------------------------------------------
def _make_convblock_kernel(N, H, W, Cin_pad, Cout_pad, pool_type, off, lp, P):
    """Build the fused ConvBlock kernel (all shape params are static)."""
    hw = H * W
    tail = lp - off - hw
    inv_cnt = 1.0 / float(N * hw)

    def conv_stage(xp_ref, wmask_ref, w_mat):
        """3x3 conv over the whole batch as ONE im2col MXU matmul + training-mode BN stats."""
        taps = []
        for dh in range(3):
            for dw in range(3):
                # value at output column q (= h*W + w) of image n is
                # xpad[n, :, off + (h+dh-1)*W + (w+dw-1)]   (flat layout, zeroed halos)
                start = off - W - 1 + dh * W + dw
                if N == 1:
                    t = xp_ref[0, :, pl.ds(start, hw)]                  # (Cpad, hw)
                else:
                    t = jnp.concatenate(
                        [xp_ref[n, :, pl.ds(start, hw)] for n in range(N)],
                        axis=1)                                          # (Cpad, N*hw)
                if dw != 1:                      # zero columns that wrapped across a row edge
                    t = t * wmask_ref[pl.ds(dw, 1), :]
                taps.append(t)
        # im2col: K = 9*Cpad on sublanes (8-aligned), N*hw on lanes -> ONE MXU matmul
        patches = jnp.concatenate(taps, axis=0)                          # (9*Cpad, N*hw)
        a = jnp.dot(w_mat, patches, preferred_element_type=jnp.float32)  # (Cout_pad, N*hw)
        # Training-mode BN stats (biased variance), one pass over the whole batch.
        # TODO(synk): switch to a two-pass / shifted-sum variance when N*H*W gets large
        # (E[x^2]-E[x]^2 cancellation on the positive-mean post-ReLU conv2 input).
        mean = jnp.sum(a, axis=1, keepdims=True) * inv_cnt
        var = jnp.maximum(jnp.sum(a * a, axis=1, keepdims=True) * inv_cnt - mean * mean, 0.0)
        return a, mean, jax.lax.rsqrt(var + EPS)                         # gamma=1, beta=0

    def kernel(x_ref, w1_ref, w2_ref, wmask_ref, spool_ref, o_ref, xp1, xp2):
        # ---- in-kernel zero padding: only the HALO columns are zeroed; the interior is
        #      fully overwritten immediately below / by the conv1 writeback ----
        xp1[:, :, pl.ds(0, off)] = jnp.zeros((N, Cin_pad, off), jnp.float32)
        xp1[:, :, pl.ds(off + hw, tail)] = jnp.zeros((N, Cin_pad, tail), jnp.float32)
        xp2[:, :, pl.ds(0, off)] = jnp.zeros((N, Cout_pad, off), jnp.float32)
        xp2[:, :, pl.ds(off + hw, tail)] = jnp.zeros((N, Cout_pad, tail), jnp.float32)
        xp1[:, :, pl.ds(off, hw)] = x_ref[...]           # place interior (lane-aligned)

        # ---- conv1 -> BN1 -> ReLU, written straight into conv2's padded buffer ----
        a1, m1, r1 = conv_stage(xp1, wmask_ref, w1_ref[...])
        y1 = jnp.maximum((a1 - m1) * r1, 0.0)            # (Cout_pad, N*hw)
        for n in range(N):
            xp2[n, :, pl.ds(off, hw)] = y1[:, n * hw:(n + 1) * hw]

        # ---- conv2 -> BN2 -> ReLU (kept as a live value; no conv2-output scratch) ----
        a2, m2, r2 = conv_stage(xp2, wmask_ref, w2_ref[...])
        y2 = jnp.maximum((a2 - m2) * r2, 0.0)            # (Cout_pad, N*hw)

        # ---- 2x2 / stride-2 pool via a one-hot gather matmul on the idle MXU:
        #      g[:, t*P + j] is the value of pooling tap t at pooled position j.
        #      Output is lane-dense (Cout_pad, N*Hh*Wh); NCHW plumbing is in the wrapper.
        g = jnp.dot(y2, spool_ref[...], preferred_element_type=jnp.float32)  # (Cout_pad, 4*P)
        p00 = g[:, 0 * P:1 * P]
        p01 = g[:, 1 * P:2 * P]
        p10 = g[:, 2 * P:3 * P]
        p11 = g[:, 3 * P:4 * P]
        res = None
        if pool_type in ("avg", "avg+max"):
            res = (p00 + p01 + p10 + p11) * 0.25
        if pool_type in ("max", "avg+max"):
            mx = jnp.maximum(jnp.maximum(p00, p01), jnp.maximum(p10, p11))
            res = mx if res is None else res + mx
        o_ref[...] = res                                  # single unmasked (8,128) store

    return kernel


# ---------------------------------------------------------------------------
# Wrapper-side constants / packing
# ---------------------------------------------------------------------------
def _vmem():
    return pl.BlockSpec(memory_space=pltpu.MemorySpace.VMEM)


def _w_edge_masks(N, H, W):
    """(3, N*H*W) masks zeroing columns whose w-1 / w+1 neighbour lies outside the row."""
    col = np.arange(N * H * W) % W
    m = np.ones((3, N * H * W), np.float32)
    m[0, col == 0] = 0.0          # tap dw=0 reads w-1: invalid at w == 0
    m[2, col == W - 1] = 0.0      # tap dw=2 reads w+1: invalid at w == W-1
    return jnp.asarray(m)


def _pool_gather_matrix(N, H, W):
    """(N*H*W, 4*N*Hh*Wh) one-hot gather: column t*P+j selects pooling tap t of position j."""
    Hh, Wh = H // 2, W // 2
    hw, P = H * W, N * Hh * Wh
    S = np.zeros((N * hw, 4 * P), np.float32)
    for t, (th, tw) in enumerate(((0, 0), (0, 1), (1, 0), (1, 1))):
        for n in range(N):
            for hh in range(Hh):
                for wh in range(Wh):
                    j = t * P + (n * Hh + hh) * Wh + wh
                    k = n * hw + (2 * hh + th) * W + (2 * wh + tw)
                    S[k, j] = 1.0
    return jnp.asarray(S)


def _pack_conv_weight(w, cin_pad, cout_pad):
    """(Cout, Cin, 3, 3) -> (Cout_pad, 9*Cin_pad); column k = (dh*3+dw)*Cin_pad + ci."""
    cout, cin = w.shape[0], w.shape[1]
    w = jnp.transpose(w, (0, 2, 3, 1)).astype(jnp.float32)       # (Cout, 3, 3, Cin)
    w = jnp.pad(w, ((0, cout_pad - cout), (0, 0), (0, 0), (0, cin_pad - cin)))
    return w.reshape(cout_pad, 9 * cin_pad)


def conv_block_forward(x_nchw, w1, w2, pool_size=(2, 2), pool_type="avg"):
    """ConvBlock.forward.  x: (N, Cin, H, W); w1: (Cout, Cin, 3, 3); w2: (Cout, Cout, 3, 3)
    (PyTorch layouts).  Returns (N, Cout, H/2, W/2)."""
    if tuple(pool_size) != (2, 2):
        # TODO(synk): only the default pool_size=(2, 2) is implemented.
        raise NotImplementedError("only pool_size=(2,2) supported")
    if pool_type not in ("avg", "max", "avg+max"):
        raise Exception("Incorrect argument!")

    N, Cin, H, W = x_nchw.shape
    Cout = w1.shape[0]
    assert H % 2 == 0 and W % 2 == 0, "2x2 pooling needs even spatial dims"
    hw = H * W
    Hh, Wh = H // 2, W // 2
    P = N * Hh * Wh
    Cin_pad, Cout_pad = _round_up(Cin, 8), _round_up(Cout, 8)
    off = _round_up(W + 1, 128)        # 128-aligned interior start (>= W+1 halo)
    lp = off + hw + off                # padded flat buffer length

    x_flat = x_nchw.reshape(N, Cin, hw).astype(jnp.float32)      # free (contiguous) reshape
    if Cin_pad != Cin:                                           # sublane-align channels
        x_flat = jnp.pad(x_flat, ((0, 0), (0, Cin_pad - Cin), (0, 0)))
    w1f = _pack_conv_weight(w1, Cin_pad, Cout_pad)
    w2f = _pack_conv_weight(w2, Cout_pad, Cout_pad)
    wmask = _w_edge_masks(N, H, W)
    spool = _pool_gather_matrix(N, H, W)

    kernel = _make_convblock_kernel(N, H, W, Cin_pad, Cout_pad, pool_type, off, lp, P)
    out = pl.pallas_call(
        kernel,
        out_shape=jax.ShapeDtypeStruct((Cout_pad, P), jnp.float32),   # lane-dense output
        in_specs=[_vmem()] * 5,
        out_specs=_vmem(),
        scratch_shapes=[
            pltpu.VMEM((N, Cin_pad, lp), jnp.float32),    # zero-padded conv1 input (flat)
            pltpu.VMEM((N, Cout_pad, lp), jnp.float32),   # zero-padded conv2 input (flat)
        ],
    )(x_flat, w1f, w2f, wmask, spool)
    # lane-dense kernel output -> NCHW (wrapper-side layout plumbing only)
    return jnp.transpose(out[:Cout].reshape(Cout, N, Hh, Wh), (1, 0, 2, 3))


def xavier_conv_weight(key, cin, cout):
    """Xavier-uniform init for a 3x3 conv in PyTorch (Cout, Cin, 3, 3) layout."""
    fan_in, fan_out = cin * 9, cout * 9
    bound = (6.0 / (fan_in + fan_out)) ** 0.5
    return jax.random.uniform(key, (cout, cin, 3, 3), jnp.float32, -bound, bound)


# ---------------------------------------------------------------------------
# Pure-JAX reference (correctness check)
# ---------------------------------------------------------------------------
def ref_forward(x, w1, w2, pool_type="avg"):
    def block(x, w):
        y = jax.lax.conv_general_dilated(
            x.astype(jnp.float32), w.astype(jnp.float32),
            window_strides=(1, 1), padding=((1, 1), (1, 1)),
            dimension_numbers=("NCHW", "OIHW", "NCHW"))
        m = jnp.mean(y, axis=(0, 2, 3), keepdims=True)
        v = jnp.mean((y - m) ** 2, axis=(0, 2, 3), keepdims=True)
        return jnp.maximum((y - m) * jax.lax.rsqrt(v + EPS), 0.0)

    x = block(x, w1)
    x = block(x, w2)
    N, C, H, W = x.shape
    xr = x.reshape(N, C, H // 2, 2, W // 2, 2)
    if pool_type == "avg":
        return xr.mean(axis=(3, 5))
    if pool_type == "max":
        return xr.max(axis=(3, 5))
    return xr.mean(axis=(3, 5)) + xr.max(axis=(3, 5))


# ---------------------------------------------------------------------------
if __name__ == "__main__":
    in_channels, out_channels = 4, 8
    N, H, W = 2, 16, 16

    key = jax.random.PRNGKey(0)
    kx, k1, k2 = jax.random.split(key, 3)
    x = jax.random.normal(kx, (N, in_channels, H, W), dtype=jnp.float32)    # NCHW input
    w1 = xavier_conv_weight(k1, in_channels, out_channels)                  # (Cout, Cin, 3, 3)
    w2 = xavier_conv_weight(k2, out_channels, out_channels)                 # (Cout, Cout, 3, 3)

    for ptype in ("avg", "max", "avg+max"):
        out = jax.block_until_ready(conv_block_forward(x, w1, w2, (2, 2), ptype))
        ref = jax.block_until_ready(ref_forward(x, w1, w2, ptype))
        assert out.shape == (N, out_channels, H // 2, W // 2), out.shape
        max_err = float(jnp.abs(out - ref).max())
        assert jnp.allclose(out, ref, rtol=1e-4, atol=1e-4), (ptype, max_err)

    print("KERNEL_OK")
</pallas_src>

<mosaic_0001>
module attributes {stable_mosaic.version = 11 : i64} {
  func.func @kernel(%arg0: memref<2x8x256xf32, #tpu.memory_space<vmem>>, %arg1: memref<8x72xf32, #tpu.memory_space<vmem>>, %arg2: memref<8x72xf32, #tpu.memory_space<vmem>>, %arg3: memref<3x512xf32, #tpu.memory_space<vmem>>, %arg4: memref<512x512xf32, #tpu.memory_space<vmem>>, %arg5: memref<8x128xf32, #tpu.memory_space<vmem>>, %arg6: memref<2x8x512xf32, #tpu.memory_space<vmem>>, %arg7: memref<2x8x512xf32, #tpu.memory_space<vmem>>) attributes {dimension_semantics = [], scalar_prefetch = 0 : i64, scratch_operands = 2 : i64, tpu.core_type = #tpu.core_type<tc>} {
    %cst = arith.constant 0.000000e+00 : f32
    %0 = vector.broadcast %cst : f32 to vector<2x8x128xf32>
    %c0 = arith.constant 0 : index
    %c0_0 = arith.constant 0 : index
    %c0_1 = arith.constant 0 : index
    %1 = vector.load %arg6[%c0, %c0_0, %c0_1] : memref<2x8x512xf32, #tpu.memory_space<vmem>>, vector<2x8x128xf32>
    tpu.vector_store %arg6[%c0, %c0_0, %c0_1], %0 {strides = array<i32>} : memref<2x8x512xf32, #tpu.memory_space<vmem>>, vector<2x8x128xf32>,
    %cst_2 = arith.constant 0.000000e+00 : f32
    %2 = vector.broadcast %cst_2 : f32 to vector<2x8x128xf32>
    %c0_3 = arith.constant 0 : index
    %c0_4 = arith.constant 0 : index
    %c384 = arith.constant 384 : index
    %3 = vector.load %arg6[%c0_3, %c0_4, %c384] : memref<2x8x512xf32, #tpu.memory_space<vmem>>, vector<2x8x128xf32>
    tpu.vector_store %arg6[%c0_3, %c0_4, %c384], %2 {strides = array<i32>} : memref<2x8x512xf32, #tpu.memory_space<vmem>>, vector<2x8x128xf32>,
    %cst_5 = arith.constant 0.000000e+00 : f32
    %4 = vector.broadcast %cst_5 : f32 to vector<2x8x128xf32>
    %c0_6 = arith.constant 0 : index
    %c0_7 = arith.constant 0 : index
    %c0_8 = arith.constant 0 : index
    %5 = vector.load %arg7[%c0_6, %c0_7, %c0_8] : memref<2x8x512xf32, #tpu.memory_space<vmem>>, vector<2x8x128xf32>
    tpu.vector_store %arg7[%c0_6, %c0_7, %c0_8], %4 {strides = array<i32>} : memref<2x8x512xf32, #tpu.memory_space<vmem>>, vector<2x8x128xf32>,
    %cst_9 = arith.constant 0.000000e+00 : f32
    %6 = vector.broadcast %cst_9 : f32 to vector<2x8x128xf32>
    %c0_10 = arith.constant 0 : index
    %c0_11 = arith.constant 0 : index
    %c384_12 = arith.constant 384 : index
    %7 = vector.load %arg7[%c0_10, %c0_11, %c384_12] : memref<2x8x512xf32, #tpu.memory_space<vmem>>, vector<2x8x128xf32>
    tpu.vector_store %arg7[%c0_10, %c0_11, %c384_12], %6 {strides = array<i32>} : memref<2x8x512xf32, #tpu.memory_space<vmem>>, vector<2x8x128xf32>,
    %c0_13 = arith.constant 0 : index
    %c0_14 = arith.constant 0 : index
    %c0_15 = arith.constant 0 : index
    %8 = vector.load %arg0[%c0_13, %c0_14, %c0_15] : memref<2x8x256xf32, #tpu.memory_space<vmem>>, vector<2x8x256xf32>
    %c0_16 = arith.constant 0 : index
    %c0_17 = arith.constant 0 : index
    %c128 = arith.constant 128 : index
    %9 = vector.load %arg6[%c0_16, %c0_17, %c128] : memref<2x8x512xf32, #tpu.memory_space<vmem>>, vector<2x8x256xf32>
    tpu.vector_store %arg6[%c0_16, %c0_17, %c128], %8 {strides = array<i32>} : memref<2x8x512xf32, #tpu.memory_space<vmem>>, vector<2x8x256xf32>,
    %c0_18 = arith.constant 0 : index
    %c0_19 = arith.constant 0 : index
    %10 = vector.load %arg1[%c0_18, %c0_19] : memref<8x72xf32, #tpu.memory_space<vmem>>, vector<8x72xf32>
    %c0_20 = arith.constant 0 : index
    %c0_21 = arith.constant 0 : index
    %c111 = arith.constant 111 : index
    %11 = vector.load %arg6[%c0_20, %c0_21, %c111] : memref<2x8x512xf32, #tpu.memory_space<vmem>>, vector<1x8x256xf32>
    %12 = vector.shape_cast %11 : vector<1x8x256xf32> to vector<8x256xf32>
    %c1 = arith.constant 1 : index
    %c0_22 = arith.constant 0 : index
    %c111_23 = arith.constant 111 : index
    %13 = vector.load %arg6[%c1, %c0_22, %c111_23] : memref<2x8x512xf32, #tpu.memory_space<vmem>>, vector<1x8x256xf32>
    %14 = vector.shape_cast %13 : vector<1x8x256xf32> to vector<8x256xf32>
    %15 = tpu.concatenate %12, %14 in 1 : vector<8x256xf32>, vector<8x256xf32> -> vector<8x512xf32>
    %c0_24 = arith.constant 0 : index
    %c0_25 = arith.constant 0 : index
    %16 = vector.load %arg3[%c0_24, %c0_25] : memref<3x512xf32, #tpu.memory_space<vmem>>, vector<1x512xf32>
    %17 = vector.broadcast %16 : vector<1x512xf32> to vector<8x512xf32>
    %18 = arith.mulf %15, %17 : vector<8x512xf32>
    %c0_26 = arith.constant 0 : index
    %c0_27 = arith.constant 0 : index
    %c112 = arith.constant 112 : index
    %19 = vector.load %arg6[%c0_26, %c0_27, %c112] : memref<2x8x512xf32, #tpu.memory_space<vmem>>, vector<1x8x256xf32>
    %20 = vector.shape_cast %19 : vector<1x8x256xf32> to vector<8x256xf32>
    %c1_28 = arith.constant 1 : index
    %c0_29 = arith.constant 0 : index
    %c112_30 = arith.constant 112 : index
    %21 = vector.load %arg6[%c1_28, %c0_29, %c112_30] : memref<2x8x512xf32, #tpu.memory_space<vmem>>, vector<1x8x256xf32>
    %22 = vector.shape_cast %21 : vector<1x8x256xf32> to vector<8x256xf32>
    %23 = tpu.concatenate %20, %22 in 1 : vector<8x256xf32>, vector<8x256xf32> -> vector<8x512xf32>
    %c0_31 = arith.constant 0 : index
    %c0_32 = arith.constant 0 : index
    %c113 = arith.constant 113 : index
    %24 = vector.load %arg6[%c0_31, %c0_32, %c113] : memref<2x8x512xf32, #tpu.memory_space<vmem>>, vector<1x8x256xf32>
    %25 = vector.shape_cast %24 : vector<1x8x256xf32> to vector<8x256xf32>
    %c1_33 = arith.constant 1 : index
    %c0_34 = arith.constant 0 : index
    %c113_35 = arith.constant 113 : index
    %26 = vector.load %arg6[%c1_33, %c0_34, %c113_35] : memref<2x8x512xf32, #tpu.memory_space<vmem>>, vector<1x8x256xf32>
    %27 = vector.shape_cast %26 : vector<1x8x256xf32> to vector<8x256xf32>
    %28 = tpu.concatenate %25, %27 in 1 : vector<8x256xf32>, vector<8x256xf32> -> vector<8x512xf32>
    %c2 = arith.constant 2 : index
    %c0_36 = arith.constant 0 : index
    %29 = vector.load %arg3[%c2, %c0_36] : memref<3x512xf32, #tpu.memory_space<vmem>>, vector<1x512xf32>
    %30 = vector.broadcast %29 : vector<1x512xf32> to vector<8x512xf32>
    %31 = arith.mulf %28, %30 : vector<8x512xf32>
    %c0_37 = arith.constant 0 : index
    %c0_38 = arith.constant 0 : index
    %c127 = arith.constant 127 : index
    %32 = vector.load %arg6[%c0_37, %c0_38, %c127] : memref<2x8x512xf32, #tpu.memory_space<vmem>>, vector<1x8x256xf32>
    %33 = vector.shape_cast %32 : vector<1x8x256xf32> to vector<8x256xf32>
    %c1_39 = arith.constant 1 : index
    %c0_40 = arith.constant 0 : index
    %c127_41 = arith.constant 127 : index
    %34 = vector.load %arg6[%c1_39, %c0_40, %c127_41] : memref<2x8x512xf32, #tpu.memory_space<vmem>>, vector<1x8x256xf32>
    %35 = vector.shape_cast %34 : vector<1x8x256xf32> to vector<8x256xf32>
    %36 = tpu.concatenate %33, %35 in 1 : vector<8x256xf32>, vector<8x256xf32> -> vector<8x512xf32>
    %c0_42 = arith.constant 0 : index
    %c0_43 = arith.constant 0 : index
    %37 = vector.load %arg3[%c0_42, %c0_43] : memref<3x512xf32, #tpu.memory_space<vmem>>, vector<1x512xf32>
    %38 = vector.broadcast %37 : vector<1x512xf32> to vector<8x512xf32>
    %39 = arith.mulf %36, %38 : vector<8x512xf32>
    %c0_44 = arith.constant 0 : index
    %c0_45 = arith.constant 0 : index
    %c128_46 = arith.constant 128 : index
    %40 = vector.load %arg6[%c0_44, %c0_45, %c128_46] : memref<2x8x512xf32, #tpu.memory_space<vmem>>, vector<1x8x256xf32>
    %41 = vector.shape_cast %40 : vector<1x8x256xf32> to vector<8x256xf32>
    %c1_47 = arith.constant 1 : index
    %c0_48 = arith.constant 0 : index
    %c128_49 = arith.constant 128 : index
    %42 = vector.load %arg6[%c1_47, %c0_48, %c128_49] : memref<2x8x512xf32, #tpu.memory_space<vmem>>, vector<1x8x256xf32>
    %43 = vector.shape_cast %42 : vector<1x8x256xf32> to vector<8x256xf32>
    %44 = tpu.concatenate %41, %43 in 1 : vector<8x256xf32>, vector<8x256xf32> -> vector<8x512xf32>
    %c0_50 = arith.constant 0 : index
    %c0_51 = arith.constant 0 : index
    %c129 = arith.constant 129 : index
    %45 = vector.load %arg6[%c0_50, %c0_51, %c129] : memref<2x8x512xf32, #tpu.memory_space<vmem>>, vector<1x8x256xf32>
    %46 = vector.shape_cast %45 : vector<1x8x256xf32> to vector<8x256xf32>
    %c1_52 = arith.constant 1 : index
    %c0_53 = arith.constant 0 : index
    %c129_54 = arith.constant 129 : index
    %47 = vector.load %arg6[%c1_52, %c0_53, %c129_54] : memref<2x8x512xf32, #tpu.memory_space<vmem>>, vector<1x8x256xf32>
    %48 = vector.shape_cast %47 : vector<1x8x256xf32> to vector<8x256xf32>
    %49 = tpu.concatenate %46, %48 in 1 : vector<8x256xf32>, vector<8x256xf32> -> vector<8x512xf32>
    %c2_55 = arith.constant 2 : index
    %c0_56 = arith.constant 0 : index
    %50 = vector.load %arg3[%c2_55, %c0_56] : memref<3x512xf32, #tpu.memory_space<vmem>>, vector<1x512xf32>
    %51 = vector.broadcast %50 : vector<1x512xf32> to vector<8x512xf32>
    %52 = arith.mulf %49, %51 : vector<8x512xf32>
    %c0_57 = arith.constant 0 : index
    %c0_58 = arith.constant 0 : index
    %c143 = arith.constant 143 : index
    %53 = vector.load %arg6[%c0_57, %c0_58, %c143] : memref<2x8x512xf32, #tpu.memory_space<vmem>>, vector<1x8x256xf32>
    %54 = vector.shape_cast %53 : vector<1x8x256xf32> to vector<8x256xf32>
    %c1_59 = arith.constant 1 : index
    %c0_60 = arith.constant 0 : index
    %c143_61 = arith.constant 143 : index
    %55 = vector.load %arg6[%c1_59, %c0_60, %c143_61] : memref<2x8x512xf32, #tpu.memory_space<vmem>>, vector<1x8x256xf32>
    %56 = vector.shape_cast %55 : vector<1x8x256xf32> to vector<8x256xf32>
    %57 = tpu.concatenate %54, %56 in 1 : vector<8x256xf32>, vector<8x256xf32> -> vector<8x512xf32>
    %c0_62 = arith.constant 0 : index
    %c0_63 = arith.constant 0 : index
    %58 = vector.load %arg3[%c0_62, %c0_63] : memref<3x512xf32, #tpu.memory_space<vmem>>, vector<1x512xf32>
    %59 = vector.broadcast %58 : vector<1x512xf32> to vector<8x512xf32>
    %60 = arith.mulf %57, %59 : vector<8x512xf32>
    %c0_64 = arith.constant 0 : index
    %c0_65 = arith.constant 0 : index
    %c144 = arith.constant 144 : index
    %61 = vector.load %arg6[%c0_64, %c0_65, %c144] : memref<2x8x512xf32, #tpu.memory_space<vmem>>, vector<1x8x256xf32>
    %62 = vector.shape_cast %61 : vector<1x8x256xf32> to vector<8x256xf32>
    %c1_66 = arith.constant 1 : index
    %c0_67 = arith.constant 0 : index
    %c144_68 = arith.constant 144 : index
    %63 = vector.load %arg6[%c1_66, %c0_67, %c144_68] : memref<2x8x512xf32, #tpu.memory_space<vmem>>, vector<1x8x256xf32>
    %64 = vector.shape_cast %63 : vector<1x8x256xf32> to vector<8x256xf32>
    %65 = tpu.concatenate %62, %64 in 1 : vector<8x256xf32>, vector<8x256xf32> -> vector<8x512xf32>
    %c0_69 = arith.constant 0 : index
    %c0_70 = arith.constant 0 : index
    %c145 = arith.constant 145 : index
    %66 = vector.load %arg6[%c0_69, %c0_70, %c145] : memref<2x8x512xf32, #tpu.memory_space<vmem>>, vector<1x8x256xf32>
    %67 = vector.shape_cast %66 : vector<1x8x256xf32> to vector<8x256xf32>
    %c1_71 = arith.constant 1 : index
    %c0_72 = arith.constant 0 : index
    %c145_73 = arith.constant 145 : index
    %68 = vector.load %arg6[%c1_71, %c0_72, %c145_73] : memref<2x8x512xf32, #tpu.memory_space<vmem>>, vector<1x8x256xf32>
    %69 = vector.shape_cast %68 : vector<1x8x256xf32> to vector<8x256xf32>
    %70 = tpu.concatenate %67, %69 in 1 : vector<8x256xf32>, vector<8x256xf32> -> vector<8x512xf32>
    %c2_74 = arith.constant 2 : index
    %c0_75 = arith.constant 0 : index
    %71 = vector.load %arg3[%c2_74, %c0_75] : memref<3x512xf32, #tpu.memory_space<vmem>>, vector<1x512xf32>
    %72 = vector.broadcast %71 : vector<1x512xf32> to vector<8x512xf32>
    %73 = arith.mulf %70, %72 : vector<8x512xf32>
    %74 = tpu.concatenate %18, %23, %31, %39, %44, %52, %60, %65, %73 in 0 : vector<8x512xf32>, vector<8x512xf32>, vector<8x512xf32>, vector<8x512xf32>, vector<8x512xf32>, vector<8x512xf32>, vector<8x512xf32>, vector<8x512xf32>, vector<8x512xf32> -> vector<72x512xf32>
    %cst_76 = arith.constant dense<0.000000e+00> : vector<8x512xf32>
    %75 = tpu.matmul %10, %74, %cst_76 {dimension_numbers = #tpu.dot_dimension_numbers<[1], [0], [0], [1], [0, 0, 1, 1], [], []>} : vector<8x72xf32>, vector<72x512xf32>, vector<8x512xf32> -> vector<8x512xf32>
    %cst_77 = arith.constant dense<0.000000e+00> : vector<8xf32>
    %76 = vector.multi_reduction <add>, %75, %cst_77 [1] : vector<8x512xf32> to vector<8xf32>
    %77 = vector.shape_cast %76 : vector<8xf32> to vector<8x1xf32>
    %cst_78 = arith.constant 0.001953125 : f32
    %78 = vector.broadcast %cst_78 : f32 to vector<8x1xf32>
    %79 = arith.mulf %77, %78 : vector<8x1xf32>
    %80 = arith.mulf %75, %75 : vector<8x512xf32>
    %cst_79 = arith.constant dense<0.000000e+00> : vector<8xf32>
    %81 = vector.multi_reduction <add>, %80, %cst_79 [1] : vector<8x512xf32> to vector<8xf32>
    %82 = vector.shape_cast %81 : vector<8xf32> to vector<8x1xf32>
    %cst_80 = arith.constant 0.001953125 : f32
    %83 = vector.broadcast %cst_80 : f32 to vector<8x1xf32>
    %84 = arith.mulf %82, %83 : vector<8x1xf32>
    %85 = arith.mulf %79, %79 : vector<8x1xf32>
    %86 = arith.subf %84, %85 : vector<8x1xf32>
    %cst_81 = arith.constant 0.000000e+00 : f32
    %87 = vector.broadcast %cst_81 : f32 to vector<8x1xf32>
    %88 = arith.maximumf %86, %87 : vector<8x1xf32>
    %cst_82 = arith.constant 9.99999974E-6 : f32
    %89 = vector.broadcast %cst_82 : f32 to vector<8x1xf32>
    %90 = arith.addf %88, %89 : vector<8x1xf32>
    %91 = math.rsqrt %90 : vector<8x1xf32>
    %92 = vector.broadcast %79 : vector<8x1xf32> to vector<8x512xf32>
    %93 = arith.subf %75, %92 : vector<8x512xf32>
    %94 = vector.broadcast %91 : vector<8x1xf32> to vector<8x512xf32>
    %95 = arith.mulf %93, %94 : vector<8x512xf32>
    %cst_83 = arith.constant 0.000000e+00 : f32
    %96 = vector.broadcast %cst_83 : f32 to vector<8x512xf32>
    %97 = arith.maximumf %95, %96 : vector<8x512xf32>
    %98 = vector.extract_strided_slice %97 {offsets = [0, 0], sizes = [8, 256], strides = [1, 1]} : vector<8x512xf32> to vector<8x256xf32>
    %c0_84 = arith.constant 0 : index
    %c0_85 = arith.constant 0 : index
    %c128_86 = arith.constant 128 : index
    %99 = vector.load %arg7[%c0_84, %c0_85, %c128_86] : memref<2x8x512xf32, #tpu.memory_space<vmem>>, vector<1x8x256xf32>
    %100 = vector.shape_cast %99 : vector<1x8x256xf32> to vector<8x256xf32>
    %101 = vector.shape_cast %98 : vector<8x256xf32> to vector<1x8x256xf32>
    tpu.vector_store %arg7[%c0_84, %c0_85, %c128_86], %101 {strides = array<i32>} : memref<2x8x512xf32, #tpu.memory_space<vmem>>, vector<1x8x256xf32>,
    %102 = vector.extract_strided_slice %97 {offsets = [0, 256], sizes = [8, 256], strides = [1, 1]} : vector<8x512xf32> to vector<8x256xf32>
    %c1_87 = arith.constant 1 : index
    %c0_88 = arith.constant 0 : index
    %c128_89 = arith.constant 128 : index
    %103 = vector.load %arg7[%c1_87, %c0_88, %c128_89] : memref<2x8x512xf32, #tpu.memory_space<vmem>>, vector<1x8x256xf32>
    %104 = vector.shape_cast %103 : vector<1x8x256xf32> to vector<8x256xf32>
    %105 = vector.shape_cast %102 : vector<8x256xf32> to vector<1x8x256xf32>
    tpu.vector_store %arg7[%c1_87, %c0_88, %c128_89], %105 {strides = array<i32>} : memref<2x8x512xf32, #tpu.memory_space<vmem>>, vector<1x8x256xf32>,
    %c0_90 = arith.constant 0 : index
    %c0_91 = arith.constant 0 : index
    %106 = vector.load %arg2[%c0_90, %c0_91] : memref<8x72xf32, #tpu.memory_space<vmem>>, vector<8x72xf32>
    %c0_92 = arith.constant 0 : index
    %c0_93 = arith.constant 0 : index
    %c111_94 = arith.constant 111 : index
    %107 = vector.load %arg7[%c0_92, %c0_93, %c111_94] : memref<2x8x512xf32, #tpu.memory_space<vmem>>, vector<1x8x256xf32>
    %108 = vector.shape_cast %107 : vector<1x8x256xf32> to vector<8x256xf32>
    %c1_95 = arith.constant 1 : index
    %c0_96 = arith.constant 0 : index
    %c111_97 = arith.constant 111 : index
    %109 = vector.load %arg7[%c1_95, %c0_96, %c111_97] : memref<2x8x512xf32, #tpu.memory_space<vmem>>, vector<1x8x256xf32>
    %110 = vector.shape_cast %109 : vector<1x8x256xf32> to vector<8x256xf32>
    %111 = tpu.concatenate %108, %110 in 1 : vector<8x256xf32>, vector<8x256xf32> -> vector<8x512xf32>
    %c0_98 = arith.constant 0 : index
    %c0_99 = arith.constant 0 : index
    %112 = vector.load %arg3[%c0_98, %c0_99] : memref<3x512xf32, #tpu.memory_space<vmem>>, vector<1x512xf32>
    %113 = vector.broadcast %112 : vector<1x512xf32> to vector<8x512xf32>
    %114 = arith.mulf %111, %113 : vector<8x512xf32>
    %c0_100 = arith.constant 0 : index
    %c0_101 = arith.constant 0 : index
    %c112_102 = arith.constant 112 : index
    %115 = vector.load %arg7[%c0_100, %c0_101, %c112_102] : memref<2x8x512xf32, #tpu.memory_space<vmem>>, vector<1x8x256xf32>
    %116 = vector.shape_cast %115 : vector<1x8x256xf32> to vector<8x256xf32>
    %c1_103 = arith.constant 1 : index
    %c0_104 = arith.constant 0 : index
    %c112_105 = arith.constant 112 : index
    %117 = vector.load %arg7[%c1_103, %c0_104, %c112_105] : memref<2x8x512xf32, #tpu.memory_space<vmem>>, vector<1x8x256xf32>
    %118 = vector.shape_cast %117 : vector<1x8x256xf32> to vector<8x256xf32>
    %119 = tpu.concatenate %116, %118 in 1 : vector<8x256xf32>, vector<8x256xf32> -> vector<8x512xf32>
    %c0_106 = arith.constant 0 : index
    %c0_107 = arith.constant 0 : index
    %c113_108 = arith.constant 113 : index
    %120 = vector.load %arg7[%c0_106, %c0_107, %c113_108] : memref<2x8x512xf32, #tpu.memory_space<vmem>>, vector<1x8x256xf32>
    %121 = vector.shape_cast %120 : vector<1x8x256xf32> to vector<8x256xf32>
    %c1_109 = arith.constant 1 : index
    %c0_110 = arith.constant 0 : index
    %c113_111 = arith.constant 113 : index
    %122 = vector.load %arg7[%c1_109, %c0_110, %c113_111] : memref<2x8x512xf32, #tpu.memory_space<vmem>>, vector<1x8x256xf32>
    %123 = vector.shape_cast %122 : vector<1x8x256xf32> to vector<8x256xf32>
    %124 = tpu.concatenate %121, %123 in 1 : vector<8x256xf32>, vector<8x256xf32> -> vector<8x512xf32>
    %c2_112 = arith.constant 2 : index
    %c0_113 = arith.constant 0 : index
    %125 = vector.load %arg3[%c2_112, %c0_113] : memref<3x512xf32, #tpu.memory_space<vmem>>, vector<1x512xf32>
    %126 = vector.broadcast %125 : vector<1x512xf32> to vector<8x512xf32>
    %127 = arith.mulf %124, %126 : vector<8x512xf32>
    %c0_114 = arith.constant 0 : index
    %c0_115 = arith.constant 0 : index
    %c127_116 = arith.constant 127 : index
    %128 = vector.load %arg7[%c0_114, %c0_115, %c127_116] : memref<2x8x512xf32, #tpu.memory_space<vmem>>, vector<1x8x256xf32>
    %129 = vector.shape_cast %128 : vector<1x8x256xf32> to vector<8x256xf32>
    %c1_117 = arith.constant 1 : index
    %c0_118 = arith.constant 0 : index
    %c127_119 = arith.constant 127 : index
    %130 = vector.load %arg7[%c1_117, %c0_118, %c127_119] : memref<2x8x512xf32, #tpu.memory_space<vmem>>, vector<1x8x256xf32>
    %131 = vector.shape_cast %130 : vector<1x8x256xf32> to vector<8x256xf32>
    %132 = tpu.concatenate %129, %131 in 1 : vector<8x256xf32>, vector<8x256xf32> -> vector<8x512xf32>
    %c0_120 = arith.constant 0 : index
    %c0_121 = arith.constant 0 : index
    %133 = vector.load %arg3[%c0_120, %c0_121] : memref<3x512xf32, #tpu.memory_space<vmem>>, vector<1x512xf32>
    %134 = vector.broadcast %133 : vector<1x512xf32> to vector<8x512xf32>
    %135 = arith.mulf %132, %134 : vector<8x512xf32>
    %c0_122 = arith.constant 0 : index
    %c0_123 = arith.constant 0 : index
    %c128_124 = arith.constant 128 : index
    %136 = vector.load %arg7[%c0_122, %c0_123, %c128_124] : memref<2x8x512xf32, #tpu.memory_space<vmem>>, vector<1x8x256xf32>
    %137 = vector.shape_cast %136 : vector<1x8x256xf32> to vector<8x256xf32>
    %c1_125 = arith.constant 1 : index
    %c0_126 = arith.constant 0 : index
    %c128_127 = arith.constant 128 : index
    %138 = vector.load %arg7[%c1_125, %c0_126, %c128_127] : memref<2x8x512xf32, #tpu.memory_space<vmem>>, vector<1x8x256xf32>
    %139 = vector.shape_cast %138 : vector<1x8x256xf32> to vector<8x256xf32>
    %140 = tpu.concatenate %137, %139 in 1 : vector<8x256xf32>, vector<8x256xf32> -> vector<8x512xf32>
    %c0_128 = arith.constant 0 : index
    %c0_129 = arith.constant 0 : index
    %c129_130 = arith.constant 129 : index
    %141 = vector.load %arg7[%c0_128, %c0_129, %c129_130] : memref<2x8x512xf32, #tpu.memory_space<vmem>>, vector<1x8x256xf32>
    %142 = vector.shape_cast %141 : vector<1x8x256xf32> to vector<8x256xf32>
    %c1_131 = arith.constant 1 : index
    %c0_132 = arith.constant 0 : index
    %c129_133 = arith.constant 129 : index
    %143 = vector.load %arg7[%c1_131, %c0_132, %c129_133] : memref<2x8x512xf32, #tpu.memory_space<vmem>>, vector<1x8x256xf32>
    %144 = vector.shape_cast %143 : vector<1x8x256xf32> to vector<8x256xf32>
    %145 = tpu.concatenate %142, %144 in 1 : vector<8x256xf32>, vector<8x256xf32> -> vector<8x512xf32>
    %c2_134 = arith.constant 2 : index
    %c0_135 = arith.constant 0 : index
    %146 = vector.load %arg3[%c2_134, %c0_135] : memref<3x512xf32, #tpu.memory_space<vmem>>, vector<1x512xf32>
    %147 = vector.broadcast %146 : vector<1x512xf32> to vector<8x512xf32>
    %148 = arith.mulf %145, %147 : vector<8x512xf32>
    %c0_136 = arith.constant 0 : index
    %c0_137 = arith.constant 0 : index
    %c143_138 = arith.constant 143 : index
    %149 = vector.load %arg7[%c0_136, %c0_137, %c143_138] : memref<2x8x512xf32, #tpu.memory_space<vmem>>, vector<1x8x256xf32>
    %150 = vector.shape_cast %149 : vector<1x8x256xf32> to vector<8x256xf32>
    %c1_139 = arith.constant 1 : index
    %c0_140 = arith.constant 0 : index
    %c143_141 = arith.constant 143 : index
    %151 = vector.load %arg7[%c1_139, %c0_140, %c143_141] : memref<2x8x512xf32, #tpu.memory_space<vmem>>, vector<1x8x256xf32>
    %152 = vector.shape_cast %151 : vector<1x8x256xf32> to vector<8x256xf32>
    %153 = tpu.concatenate %150, %152 in 1 : vector<8x256xf32>, vector<8x256xf32> -> vector<8x512xf32>
    %c0_142 = arith.constant 0 : index
    %c0_143 = arith.constant 0 : index
    %154 = vector.load %arg3[%c0_142, %c0_143] : memref<3x512xf32, #tpu.memory_space<vmem>>, vector<1x512xf32>
    %155 = vector.broadcast %154 : vector<1x512xf32> to vector<8x512xf32>
    %156 = arith.mulf %153, %155 : vector<8x512xf32>
    %c0_144 = arith.constant 0 : index
    %c0_145 = arith.constant 0 : index
    %c144_146 = arith.constant 144 : index
    %157 = vector.load %arg7[%c0_144, %c0_145, %c144_146] : memref<2x8x512xf32, #tpu.memory_space<vmem>>, vector<1x8x256xf32>
    %158 = vector.shape_cast %157 : vector<1x8x256xf32> to vector<8x256xf32>
    %c1_147 = arith.constant 1 : index
    %c0_148 = arith.constant 0 : index
    %c144_149 = arith.constant 144 : index
    %159 = vector.load %arg7[%c1_147, %c0_148, %c144_149] : memref<2x8x512xf32, #tpu.memory_space<vmem>>, vector<1x8x256xf32>
    %160 = vector.shape_cast %159 : vector<1x8x256xf32> to vector<8x256xf32>
    %161 = tpu.concatenate %158, %160 in 1 : vector<8x256xf32>, vector<8x256xf32> -> vector<8x512xf32>
    %c0_150 = arith.constant 0 : index
    %c0_151 = arith.constant 0 : index
    %c145_152 = arith.constant 145 : index
    %162 = vector.load %arg7[%c0_150, %c0_151, %c145_152] : memref<2x8x512xf32, #tpu.memory_space<vmem>>, vector<1x8x256xf32>
    %163 = vector.shape_cast %162 : vector<1x8x256xf32> to vector<8x256xf32>
    %c1_153 = arith.constant 1 : index
    %c0_154 = arith.constant 0 : index
    %c145_155 = arith.constant 145 : index
    %164 = vector.load %arg7[%c1_153, %c0_154, %c145_155] : memref<2x8x512xf32, #tpu.memory_space<vmem>>, vector<1x8x256xf32>
    %165 = vector.shape_cast %164 : vector<1x8x256xf32> to vector<8x256xf32>
    %166 = tpu.concatenate %163, %165 in 1 : vector<8x256xf32>, vector<8x256xf32> -> vector<8x512xf32>
    %c2_156 = arith.constant 2 : index
    %c0_157 = arith.constant 0 : index
    %167 = vector.load %arg3[%c2_156, %c0_157] : memref<3x512xf32, #tpu.memory_space<vmem>>, vector<1x512xf32>
    %168 = vector.broadcast %167 : vector<1x512xf32> to vector<8x512xf32>
    %169 = arith.mulf %166, %168 : vector<8x512xf32>
    %170 = tpu.concatenate %114, %119, %127, %135, %140, %148, %156, %161, %169 in 0 : vector<8x512xf32>, vector<8x512xf32>, vector<8x512xf32>, vector<8x512xf32>, vector<8x512xf32>, vector<8x512xf32>, vector<8x512xf32>, vector<8x512xf32>, vector<8x512xf32> -> vector<72x512xf32>
    %cst_158 = arith.constant dense<0.000000e+00> : vector<8x512xf32>
    %171 = tpu.matmul %106, %170, %cst_158 {dimension_numbers = #tpu.dot_dimension_numbers<[1], [0], [0], [1], [0, 0, 1, 1], [], []>} : vector<8x72xf32>, vector<72x512xf32>, vector<8x512xf32> -> vector<8x512xf32>
    %cst_159 = arith.constant dense<0.000000e+00> : vector<8xf32>
    %172 = vector.multi_reduction <add>, %171, %cst_159 [1] : vector<8x512xf32> to vector<8xf32>
    %173 = vector.shape_cast %172 : vector<8xf32> to vector<8x1xf32>
    %cst_160 = arith.constant 0.001953125 : f32
    %174 = vector.broadcast %cst_160 : f32 to vector<8x1xf32>
    %175 = arith.mulf %173, %174 : vector<8x1xf32>
    %176 = arith.mulf %171, %171 : vector<8x512xf32>
    %cst_161 = arith.constant dense<0.000000e+00> : vector<8xf32>
    %177 = vector.multi_reduction <add>, %176, %cst_161 [1] : vector<8x512xf32> to vector<8xf32>
    %178 = vector.shape_cast %177 : vector<8xf32> to vector<8x1xf32>
    %cst_162 = arith.constant 0.001953125 : f32
    %179 = vector.broadcast %cst_162 : f32 to vector<8x1xf32>
    %180 = arith.mulf %178, %179 : vector<8x1xf32>
    %181 = arith.mulf %175, %175 : vector<8x1xf32>
    %182 = arith.subf %180, %181 : vector<8x1xf32>
    %cst_163 = arith.constant 0.000000e+00 : f32
    %183 = vector.broadcast %cst_163 : f32 to vector<8x1xf32>
    %184 = arith.maximumf %182, %183 : vector<8x1xf32>
    %cst_164 = arith.constant 9.99999974E-6 : f32
    %185 = vector.broadcast %cst_164 : f32 to vector<8x1xf32>
    %186 = arith.addf %184, %185 : vector<8x1xf32>
    %187 = math.rsqrt %186 : vector<8x1xf32>
    %188 = vector.broadcast %175 : vector<8x1xf32> to vector<8x512xf32>
    %189 = arith.subf %171, %188 : vector<8x512xf32>
    %190 = vector.broadcast %187 : vector<8x1xf32> to vector<8x512xf32>
    %191 = arith.mulf %189, %190 : vector<8x512xf32>
    %cst_165 = arith.constant 0.000000e+00 : f32
    %192 = vector.broadcast %cst_165 : f32 to vector<8x512xf32>
    %193 = arith.maximumf %191, %192 : vector<8x512xf32>
    %c0_166 = arith.constant 0 : index
    %c0_167 = arith.constant 0 : index
    %194 = vector.load %arg4[%c0_166, %c0_167] : memref<512x512xf32, #tpu.memory_space<vmem>>, vector<512x512xf32>
    %cst_168 = arith.constant dense<0.000000e+00> : vector<8x512xf32>
    %195 = tpu.matmul %193, %194, %cst_168 {dimension_numbers = #tpu.dot_dimension_numbers<[1], [0], [0], [1], [0, 0, 1, 1], [], []>} : vector<8x512xf32>, vector<512x512xf32>, vector<8x512xf32> -> vector<8x512xf32>
    %196 = vector.extract_strided_slice %195 {offsets = [0, 0], sizes = [8, 128], strides = [1, 1]} : vector<8x512xf32> to vector<8x128xf32>
    %197 = vector.extract_strided_slice %195 {offsets = [0, 128], sizes = [8, 128], strides = [1, 1]} : vector<8x512xf32> to vector<8x128xf32>
    %198 = vector.extract_strided_slice %195 {offsets = [0, 256], sizes = [8, 128], strides = [1, 1]} : vector<8x512xf32> to vector<8x128xf32>
    %199 = vector.extract_strided_slice %195 {offsets = [0, 384], sizes = [8, 128], strides = [1, 1]} : vector<8x512xf32> to vector<8x128xf32>
    %200 = arith.addf %196, %197 : vector<8x128xf32>
    %201 = arith.addf %200, %198 : vector<8x128xf32>
    %202 = arith.addf %201, %199 : vector<8x128xf32>
    %cst_169 = arith.constant 2.500000e-01 : f32
    %203 = vector.broadcast %cst_169 : f32 to vector<8x128xf32>
    %204 = arith.mulf %202, %203 : vector<8x128xf32>
    %c0_170 = arith.constant 0 : index
    %c0_171 = arith.constant 0 : index
    %205 = vector.load %arg5[%c0_170, %c0_171] : memref<8x128xf32, #tpu.memory_space<vmem>>, vector<8x128xf32>
    tpu.vector_store %arg5[%c0_170, %c0_171], %204 {strides = array<i32>} : memref<8x128xf32, #tpu.memory_space<vmem>>, vector<8x128xf32>,
    return
  }
}

</mosaic_0001>

<llo_original>
// kernel: tpu_custom_call.1
$region0: #{tpu_custom_call.1}
  #allocation0 [shape = 'u32[]', space=smem, size = 0x4, offset = 0x4, fixed_abs, tag = 'smem constant byte address 0x4 - core index']
  #allocation1 [shape = 'u32[144,128]{1,0:T(1,128)}', space=vmem, size = 0x12000, scoped, tag = 'internal scratch']
  #allocation2 [shape = 'f32[2,8,512]{2,1,0:T(8,128)}', space=vmem, size = 0x8000, scoped, tag = 'scratch operand']
  #allocation3 [shape = 'f32[2,8,512]{2,1,0:T(8,128)}', space=vmem, size = 0x8000, scoped, tag = 'scratch operand']
  %s0 = inlined_call_operand.hbm [shape: f32[2,8,256], index: 0, kind: input, shape index: {}]
  %s1 = inlined_call_operand.hbm [shape: f32[8,72], index: 1, kind: input, shape index: {}]
  %s2 = inlined_call_operand.hbm [shape: f32[8,72], index: 2, kind: input, shape index: {}]
  %s3 = inlined_call_operand.hbm [shape: f32[3,512], index: 3, kind: input, shape index: {}]
  %s4 = inlined_call_operand.hbm [shape: f32[512,512], index: 4, kind: input, shape index: {}]
  %s5 = inlined_call_operand.hbm [shape: f32[8,128], index: 5, kind: output, shape index: {}]
  %s6 = sld [smem:[#allocation0]]
  $region50: #{tpu_custom_call.1} parent=0
    _
  %s8 = ssub.s32 1, %s6
  %s9 = scalar_select 0, %s8, %s6
  $region1: #{tpu_custom_call.1} parent=0
    #allocation4 [shape = 'u8[16384]{0}', space=vmem, size = 0x4000, scoped, tag = 'input window, operand 0, single buffered']
    #allocation5 [shape = 's32[1]{0}', space=sflag, size = 0x4, scoped, tag = 'scoped memory for tpu_custom_call.1']
    #allocation6 [shape = 's32[1]{0}', space=sflag, size = 0x4, scoped, tag = 'scoped memory for tpu_custom_call.1']
    #allocation7 [shape = 'u8[4096]{0}', space=vmem, size = 0x1000, scoped, tag = 'input window, operand 1, single buffered']
    #allocation8 [shape = 's32[1]{0}', space=sflag, size = 0x4, scoped, tag = 'scoped memory for tpu_custom_call.1']
    #allocation9 [shape = 'u8[4096]{0}', space=vmem, size = 0x1000, scoped, tag = 'input window, operand 2, single buffered']
    #allocation10 [shape = 'u8[8192]{0}', space=vmem, size = 0x2000, scoped, tag = 'input window, operand 3, single buffered']
    #allocation11 [shape = 's32[1]{0}', space=sflag, size = 0x4, scoped, tag = 'scoped memory for tpu_custom_call.1']
    #allocation12 [shape = 'u8[1048576]{0}', space=vmem, size = 0x100000, scoped, tag = 'input window, operand 4, single buffered']
    #allocation13 [shape = 'u8[4096]{0}', space=vmem, size = 0x1000, scoped, tag = 'output window, operand 0, single buffered']
    %10 = vsyncpa [#allocation5], 0
    %11 = vsyncpa [#allocation8], 0
    %12 = vsyncpa [#allocation11], 0
    %13 = vsyncpa [#allocation6], 0
    // Predicated region
    $region2: #{tpu_custom_call.1} parent=1 // pred_check
      _
    $region3: #{tpu_custom_call.1} parent=1 // pred_check_branch
      %15 = sbr.rel (0) target = $region5
    $region4: #{tpu_custom_call.1} parent=1 // pred_region
      %s17 = ssub.s32 512, 512
      %18 = vsyncadd [#allocation5], %s17
      %s19 = sshll.u32 [#allocation4], 4
      %s20 = int_to_ptr.vmem [resolvable:$true] %s19
      %25 = dma.hbm_to_vmem [thread:$0]  %s0, 512, %s20, [#allocation5], 256, 256, 16
    $region5: #{tpu_custom_call.1} parent=1 // pred_fallthru
      _
    // Predicated region
    $region6: #{tpu_custom_call.1} parent=1 // pred_check
      _
    $region7: #{tpu_custom_call.1} parent=1 // pred_check_branch
      %27 = sbr.rel (0) target = $region9
    $region8: #{tpu_custom_call.1} parent=1 // pred_region
      %s29 = ssub.s32 128, 128
      %30 = vsyncadd [#allocation8], %s29
      %s32 = sshll.u32 [#allocation7], 4
      %s33 = int_to_ptr.vmem [resolvable:$true] %s32
      %35 = dma.hbm_to_vmem [thread:$0]  %s1, 128, %s33, [#allocation8]
    $region9: #{tpu_custom_call.1} parent=1 // pred_fallthru
      _
    // Predicated region
    $region10: #{tpu_custom_call.1} parent=1 // pred_check
      _
    $region11: #{tpu_custom_call.1} parent=1 // pred_check_branch
      %37 = sbr.rel (0) target = $region13
    $region12: #{tpu_custom_call.1} parent=1 // pred_region
      %s39 = ssub.s32 128, 128
      %40 = vsyncadd [#allocation8], %s39
      %s42 = sshll.u32 [#allocation9], 4
      %s43 = int_to_ptr.vmem [resolvable:$true] %s42
      %45 = dma.hbm_to_vmem [thread:$0]  %s2, 128, %s43, [#allocation8]
    $region13: #{tpu_custom_call.1} parent=1 // pred_fallthru
      _
    // Predicated region
    $region14: #{tpu_custom_call.1} parent=1 // pred_check
      _
    $region15: #{tpu_custom_call.1} parent=1 // pred_check_branch
      %47 = sbr.rel (0) target = $region17
    $region16: #{tpu_custom_call.1} parent=1 // pred_region
      %s49 = ssub.s32 256, 256
      %50 = vsyncadd [#allocation11], %s49
      %s52 = sshll.u32 [#allocation10], 4
      %s53 = int_to_ptr.vmem [resolvable:$true] %s52
      %55 = dma.hbm_to_vmem [thread:$0]  %s3, 256, %s53, [#allocation11]
    $region17: #{tpu_custom_call.1} parent=1 // pred_fallthru
      _
    // Predicated region
    $region18: #{tpu_custom_call.1} parent=1 // pred_check
      _
    $region19: #{tpu_custom_call.1} parent=1 // pred_check_branch
      %57 = sbr.rel (0) target = $region21
    $region20: #{tpu_custom_call.1} parent=1 // pred_region
      %s59 = ssub.s32 32768, 32768
      %60 = vsyncadd [#allocation11], %s59
      %s61 = sshll.u32 [#allocation12], 4
      %s62 = int_to_ptr.vmem [resolvable:$true] %s61
      %67 = dma.hbm_to_vmem [thread:$0]  %s4, 32768, %s62, [#allocation11], 512, 512, 32
    $region21: #{tpu_custom_call.1} parent=1 // pred_fallthru
      _
    // Predicated region
    $region22: #{tpu_custom_call.1} parent=1 // pred_check
      _
    $region23: #{tpu_custom_call.1} parent=1 // pred_check_branch
      %69 = sbr.rel (0) target = $region25
    $region24: #{tpu_custom_call.1} parent=1 // pred_region
      %70 = dma.done [#allocation5], 512
    $region25: #{tpu_custom_call.1} parent=1 // pred_fallthru
      _
    // Predicated region
    $region26: #{tpu_custom_call.1} parent=1 // pred_check
      _
    $region27: #{tpu_custom_call.1} parent=1 // pred_check_branch
      %72 = sbr.rel (0) target = $region29
    $region28: #{tpu_custom_call.1} parent=1 // pred_region
      %73 = dma.done [#allocation8], 128
    $region29: #{tpu_custom_call.1} parent=1 // pred_fallthru
      _
    // Predicated region
    $region30: #{tpu_custom_call.1} parent=1 // pred_check
      _
    $region31: #{tpu_custom_call.1} parent=1 // pred_check_branch
      %75 = sbr.rel (0) target = $region33
    $region32: #{tpu_custom_call.1} parent=1 // pred_region
      %76 = dma.done [#allocation8], 128
    $region33: #{tpu_custom_call.1} parent=1 // pred_fallthru
      _
    // Predicated region
    $region34: #{tpu_custom_call.1} parent=1 // pred_check
      _
    $region35: #{tpu_custom_call.1} parent=1 // pred_check_branch
      %78 = sbr.rel (0) target = $region37
    $region36: #{tpu_custom_call.1} parent=1 // pred_region
      %79 = dma.done [#allocation11], 256
    $region37: #{tpu_custom_call.1} parent=1 // pred_fallthru
      _
    // Predicated region
    $region38: #{tpu_custom_call.1} parent=1 // pred_check
      _
    $region39: #{tpu_custom_call.1} parent=1 // pred_check_branch
      %81 = sbr.rel (0) target = $region41
    $region40: #{tpu_custom_call.1} parent=1 // pred_region
      %82 = dma.done [#allocation11], 32768
    $region41: #{tpu_custom_call.1} parent=1 // pred_fallthru
      _
    %83 = vst [vmem:[#allocation2] sm:$0xff] 0.0
    %84 = vst [vmem:[#allocation2 + $0x20] sm:$0xff] 0.0
    %85 = vst [vmem:[#allocation2 + $0x18] sm:$0xff] 0.0
    %86 = vst [vmem:[#allocation2 + $0x38] sm:$0xff] 0.0
    %87 = vst [vmem:[#allocation3] sm:$0xff] 0.0
    %88 = vst [vmem:[#allocation3 + $0x20] sm:$0xff] 0.0
    %89 = vst [vmem:[#allocation3 + $0x18] sm:$0xff] 0.0
    %90 = vst [vmem:[#allocation3 + $0x38] sm:$0xff] 0.0
    %v91 = vld [vmem:[#allocation4] sm:$0xff]
    %v92 = vld [vmem:[#allocation4 + $0x8] sm:$0xff]
    %v93 = vld [vmem:[#allocation4 + $0x10] sm:$0xff]
    %v94 = vld [vmem:[#allocation4 + $0x18] sm:$0xff]
    %95 = vst [vmem:[#allocation2 + $0x8] sm:$0xff] %v91
    %96 = vst [vmem:[#allocation2 + $0x10] sm:$0xff] %v92
    %97 = vst [vmem:[#allocation2 + $0x28] sm:$0xff] %v93
    %98 = vst [vmem:[#allocation2 + $0x30] sm:$0xff] %v94
    %v99 = vld [vmem:[#allocation7] sm:$0xff]
    %v100 = vld [vmem:[#allocation2] sm:$0xff]
    %v101 = vld [vmem:[#allocation2 + $0x8] sm:$0xff]
    %v102 = vld [vmem:[#allocation2 + $0x10] sm:$0xff]
    %s103 = scalar_lea.vmem [#allocation2], 32
    %v104 = vld [vmem:[%s103] sm:$0xff]
    %v105 = vld [vmem:[%s103 + $0x8] sm:$0xff]
    %v106 = vld [vmem:[%s103 + $0x10] sm:$0xff]
    %110 = vrot.lane.b32.xlu0 %v100, 17
    %v111 = vpop.permute.xlu0 %110
    %112 = vrot.lane.b32.xlu0 %v101, 17
    %v113 = vpop.permute.xlu0 %112
    %114 = vrot.lane.b32.xlu0 %v102, 17
    %v115 = vpop.permute.xlu0 %114
    %vm116 = vcmask 138240
    %v117 = vsel %vm116, %v111, %v113
    %v118 = vsel %vm116, %v113, %v115
    %124 = vrot.lane.b32.xlu0 %v104, 17
    %v125 = vpop.permute.xlu0 %124
    %126 = vrot.lane.b32.xlu0 %v105, 17
    %v127 = vpop.permute.xlu0 %126
    %128 = vrot.lane.b32.xlu0 %v106, 17
    %v129 = vpop.permute.xlu0 %128
    %v130 = vsel %vm116, %v125, %v127
    %v131 = vsel %vm116, %v127, %v129
    %v134 = vld [vmem:[#allocation10] ss:$4 sm:$0xf]
    %v136 = vlaneseq
    %v137 = vshrl.u32 %v136, 7
    %v138 = vsub.s32 0, %v137
    %v139 = vrot.slane %v134, %v138
    %v140 = vlaneseq
    %v141 = vshrl.u32 %v140, 7
    %v142 = vsub.s32 1, %v141
    %v143 = vrot.slane %v134, %v142
    %v144 = vlaneseq
    %v145 = vshrl.u32 %v144, 7
    %v146 = vsub.s32 2, %v145
    %v147 = vrot.slane %v134, %v146
    %v148 = vlaneseq
    %v149 = vshrl.u32 %v148, 7
    %v150 = vsub.s32 3, %v149
    %v151 = vrot.slane %v134, %v150
    %v156 = vmul.f32 %v117, %v139
    %v157 = vmul.f32 %v118, %v143
    %v158 = vmul.f32 %v130, %v147
    %v159 = vmul.f32 %v131, %v151
    %160 = vrot.lane.b32.xlu0 %v100, 16
    %v161 = vpop.permute.xlu0 %160
    %162 = vrot.lane.b32.xlu0 %v101, 16
    %v163 = vpop.permute.xlu0 %162
    %164 = vrot.lane.b32.xlu0 %v102, 16
    %v165 = vpop.permute.xlu0 %164
    %vm166 = vcmask 130048
    %v167 = vsel %vm166, %v161, %v163
    %v168 = vsel %vm166, %v163, %v165
    %171 = vrot.lane.b32.xlu0 %v104, 16
    %v172 = vpop.permute.xlu0 %171
    %173 = vrot.lane.b32.xlu0 %v105, 16
    %v174 = vpop.permute.xlu0 %173
    %175 = vrot.lane.b32.xlu0 %v106, 16
    %v176 = vpop.permute.xlu0 %175
    %v177 = vsel %vm166, %v172, %v174
    %v178 = vsel %vm166, %v174, %v176
    %181 = vrot.lane.b32.xlu0 %v100, 15
    %v182 = vpop.permute.xlu0 %181
    %183 = vrot.lane.b32.xlu0 %v101, 15
    %v184 = vpop.permute.xlu0 %183
    %185 = vrot.lane.b32.xlu0 %v102, 15
    %v186 = vpop.permute.xlu0 %185
    %vm187 = vcmask 121856
    %v188 = vsel %vm187, %v182, %v184
    %v189 = vsel %vm187, %v184, %v186
    %192 = vrot.lane.b32.xlu0 %v104, 15
    %v193 = vpop.permute.xlu0 %192
    %194 = vrot.lane.b32.xlu0 %v105, 15
    %v195 = vpop.permute.xlu0 %194
    %196 = vrot.lane.b32.xlu0 %v106, 15
    %v197 = vpop.permute.xlu0 %196
    %v198 = vsel %vm187, %v193, %v195
    %v199 = vsel %vm187, %v195, %v197
    %s202 = scalar_lea.vmem [#allocation10], 2
    %v203 = vld [vmem:[%s202] ss:$4 sm:$0xf]
    %v205 = vlaneseq
    %v206 = vshrl.u32 %v205, 7
    %v207 = vsub.s32 0, %v206
    %v208 = vrot.slane %v203, %v207
    %v209 = vlaneseq
    %v210 = vshrl.u32 %v209, 7
    %v211 = vsub.s32 1, %v210
    %v212 = vrot.slane %v203, %v211
    %v213 = vlaneseq
    %v214 = vshrl.u32 %v213, 7
    %v215 = vsub.s32 2, %v214
    %v216 = vrot.slane %v203, %v215
    %v217 = vlaneseq
    %v218 = vshrl.u32 %v217, 7
    %v219 = vsub.s32 3, %v218
    %v220 = vrot.slane %v203, %v219
    %v225 = vmul.f32 %v188, %v208
    %v226 = vmul.f32 %v189, %v212
    %v227 = vmul.f32 %v198, %v216
    %v228 = vmul.f32 %v199, %v220
    %229 = vrot.lane.b32.xlu0 %v100, 1
    %v230 = vpop.permute.xlu0 %229
    %231 = vrot.lane.b32.xlu0 %v101, 1
    %v232 = vpop.permute.xlu0 %231
    %233 = vrot.lane.b32.xlu0 %v102, 1
    %v234 = vpop.permute.xlu0 %233
    %vm235 = vcmask 7168
    %v236 = vsel %vm235, %v230, %v232
    %v237 = vsel %vm235, %v232, %v234
    %240 = vrot.lane.b32.xlu0 %v104, 1
    %v241 = vpop.permute.xlu0 %240
    %242 = vrot.lane.b32.xlu0 %v105, 1
    %v243 = vpop.permute.xlu0 %242
    %244 = vrot.lane.b32.xlu0 %v106, 1
    %v245 = vpop.permute.xlu0 %244
    %v246 = vsel %vm235, %v241, %v243
    %v247 = vsel %vm235, %v243, %v245
    %v250 = vmul.f32 %v236, %v139
    %v251 = vmul.f32 %v237, %v143
    %v252 = vmul.f32 %v246, %v147
    %v253 = vmul.f32 %v247, %v151
    %v254 = vld [vmem:[#allocation2 + $0x18] sm:$0xff]
    %v255 = vld [vmem:[%s103 + $0x18] sm:$0xff]
    %257 = vrot.lane.b32.xlu0 %v101, 127
    %v258 = vpop.permute.xlu0 %257
    %259 = vrot.lane.b32.xlu0 %v102, 127
    %v260 = vpop.permute.xlu0 %259
    %261 = vrot.lane.b32.xlu0 %v254, 127
    %v262 = vpop.permute.xlu0 %261
    %vm263 = vcmask 1039360
    %v264 = vsel %vm263, %v258, %v260
    %v265 = vsel %vm263, %v260, %v262
    %269 = vrot.lane.b32.xlu0 %v105, 127
    %v270 = vpop.permute.xlu0 %269
    %271 = vrot.lane.b32.xlu0 %v106, 127
    %v272 = vpop.permute.xlu0 %271
    %273 = vrot.lane.b32.xlu0 %v255, 127
    %v274 = vpop.permute.xlu0 %273
    %v275 = vsel %vm263, %v270, %v272
    %v276 = vsel %vm263, %v272, %v274
    %v279 = vmul.f32 %v264, %v208
    %v280 = vmul.f32 %v265, %v212
    %v281 = vmul.f32 %v275, %v216
    %v282 = vmul.f32 %v276, %v220
    %283 = vrot.lane.b32.xlu0 %v101, 113
    %v284 = vpop.permute.xlu0 %283
    %285 = vrot.lane.b32.xlu0 %v102, 113
    %v286 = vpop.permute.xlu0 %285
    %287 = vrot.lane.b32.xlu0 %v254, 113
    %v288 = vpop.permute.xlu0 %287
    %vm289 = vcmask 924672
    %v290 = vsel %vm289, %v284, %v286
    %v291 = vsel %vm289, %v286, %v288
    %294 = vrot.lane.b32.xlu0 %v105, 113
    %v295 = vpop.permute.xlu0 %294
    %296 = vrot.lane.b32.xlu0 %v106, 113
    %v297 = vpop.permute.xlu0 %296
    %298 = vrot.lane.b32.xlu0 %v255, 113
    %v299 = vpop.permute.xlu0 %298
    %v300 = vsel %vm289, %v295, %v297
    %v301 = vsel %vm289, %v297, %v299
    %v304 = vmul.f32 %v290, %v139
    %v305 = vmul.f32 %v291, %v143
    %v306 = vmul.f32 %v300, %v147
    %v307 = vmul.f32 %v301, %v151
    %308 = vrot.lane.b32.xlu0 %v101, 112
    %v309 = vpop.permute.xlu0 %308
    %310 = vrot.lane.b32.xlu0 %v102, 112
    %v311 = vpop.permute.xlu0 %310
    %312 = vrot.lane.b32.xlu0 %v254, 112
    %v313 = vpop.permute.xlu0 %312
    %vm314 = vcmask 916480
    %v315 = vsel %vm314, %v309, %v311
    %v316 = vsel %vm314, %v311, %v313
    %319 = vrot.lane.b32.xlu0 %v105, 112
    %v320 = vpop.permute.xlu0 %319
    %321 = vrot.lane.b32.xlu0 %v106, 112
    %v322 = vpop.permute.xlu0 %321
    %323 = vrot.lane.b32.xlu0 %v255, 112
    %v324 = vpop.permute.xlu0 %323
    %v325 = vsel %vm314, %v320, %v322
    %v326 = vsel %vm314, %v322, %v324
    %329 = vrot.lane.b32.xlu0 %v101, 111
    %v330 = vpop.permute.xlu0 %329
    %331 = vrot.lane.b32.xlu0 %v102, 111
    %v332 = vpop.permute.xlu0 %331
    %333 = vrot.lane.b32.xlu0 %v254, 111
    %v334 = vpop.permute.xlu0 %333
    %vm335 = vcmask 908288
    %v336 = vsel %vm335, %v330, %v332
    %v337 = vsel %vm335, %v332, %v334
    %340 = vrot.lane.b32.xlu0 %v105, 111
    %v341 = vpop.permute.xlu0 %340
    %342 = vrot.lane.b32.xlu0 %v106, 111
    %v343 = vpop.permute.xlu0 %342
    %344 = vrot.lane.b32.xlu0 %v255, 111
    %v345 = vpop.permute.xlu0 %344
    %v346 = vsel %vm335, %v341, %v343
    %v347 = vsel %vm335, %v343, %v345
    %v350 = vmul.f32 %v336, %v208
    %v351 = vmul.f32 %v337, %v212
    %v352 = vmul.f32 %v346, %v216
    %v353 = vmul.f32 %v347, %v220
    %vm354 = vcmask 588800
    %v356 = vsel %vm354, %v99, 0
    %358 = vmatprep.subr.mxu0 %v157
    %359 = vmatpush1.msra.mxu0 %v156
    %360 = vmatprep.subr.mxu0 %v168
    %361 = vmatpush1.msra.mxu0 %v167
    %362 = vmatprep.subr.mxu0 %v226
    %363 = vmatpush1.msra.mxu0 %v225
    %364 = vmatprep.subr.mxu0 %v251
    %365 = vmatpush1.msra.mxu0 %v250
    %366 = vmatprep.subr.mxu0 %v102
    %367 = vmatpush1.msra.mxu0 %v101
    %368 = vmatprep.subr.mxu0 %v280
    %369 = vmatpush1.msra.mxu0 %v279
    %370 = vmatprep.subr.mxu0 %v305
    %371 = vmatpush1.msra.mxu0 %v304
    %372 = vmatprep.subr.mxu0 %v316
    %373 = vmatpush1.msra.mxu0 %v315
    %374 = vmatprep.subr.mxu0 %v351
    %375 = vmatpush1.msra.mxu0 %v350
    %376 = vmatprep.subr.mxu0 0.0
    %377 = vmatpush1.msra.mxu0 0.0
    %378 = vmatprep.subr.mxu0 0.0
    %379 = vmatpush1.msra.mxu0 0.0
    %380 = vmatprep.subr.mxu0 0.0
    %381 = vmatpush1.msra.mxu0 0.0
    %382 = vmatprep.subr.mxu0 0.0
    %383 = vmatpush1.msra.mxu0 0.0
    %384 = vmatprep.subr.mxu0 0.0
    %385 = vmatpush1.msra.mxu0 0.0
    %386 = vmatprep.subr.mxu0 0.0
    %387 = vmatpush1.msra.mxu0 0.0
    %388 = vmatprep.subr.mxu0 0.0
    %389 = vmatpush1.msra.mxu0 0.0
    %390 = vmatprep.subr.mxu0 0.0
    %391 = vmatpush1.msra.mxu0 0.0
    %392 = vmatprep.subr.mxu0 0.0
    %393 = vmatpush1.msra.mxu0 0.0
    %394 = vmatprep.subr.mxu0 0.0
    %395 = vmatpush1.msra.mxu0 0.0
    %396 = vmatprep.subr.mxu0 0.0
    %397 = vmatpush1.msra.mxu0 0.0
    %398 = vmatprep.subr.mxu0 0.0
    %399 = vmatpush1.msra.mxu0 0.0
    %400 = vmatprep.subr.mxu0 0.0
    %401 = vmatpush1.msra.mxu0 0.0
    %402 = vmatprep.subr.mxu0 0.0
    %403 = vmatpush1.msra.mxu0 0.0
    %404 = vmatprep.subr.mxu0 0.0
    %405 = vmatpush1.msra.mxu0 0.0
    %406 = vmatprep.subr.mxu0 0.0
    %407 = vmatpush1.msra.mxu0 0.0
    %408 = vmatprep.subr.mxu0 0.0
    %409 = vmatpush1.msra.mxu0 0.0
    %410 = vmatprep.subr.mxu0 0.0
    %411 = vmatpush1.msra.mxu0 0.0
    %412 = vmatprep.subr.mxu0 0.0
    %413 = vmatpush1.msra.mxu0 0.0
    %414 = vmatprep.subr.mxu0 0.0
    %415 = vmatpush1.msra.mxu0 0.0
    %416 = vmatprep.subr.mxu0 0.0
    %417 = vmatpush1.msra.mxu0 0.0
    %418 = vmatprep.subr.mxu0 0.0
    %419 = vmatpush1.msra.mxu0 0.0
    %420 = vmatprep.subr.mxu0 0.0
    %421 = vmatpush1.msra.mxu0 0.0
    %422 = vmatprep.mubr.f32.mxu0 0.0
    %423 = vmatmul.mubr.f32.gmra.mrb[0].mxu0 %v356
    %v424 = vpop.f32.mrb[0].mxu0
    %v425 = vadd.f32 0.0, %v424
    %v426 = vpop.f32.mrb[0].mxu0
    %v427 = vadd.f32 0.0, %v426
    %428 = vdwg.mxu0
    %429 = vmatprep.subr.mxu0 %v159
    %430 = vmatpush1.msra.mxu0 %v158
    %431 = vmatprep.subr.mxu0 %v178
    %432 = vmatpush1.msra.mxu0 %v177
    %433 = vmatprep.subr.mxu0 %v228
    %434 = vmatpush1.msra.mxu0 %v227
    %435 = vmatprep.subr.mxu0 %v253
    %436 = vmatpush1.msra.mxu0 %v252
    %437 = vmatprep.subr.mxu0 %v106
    %438 = vmatpush1.msra.mxu0 %v105
    %439 = vmatprep.subr.mxu0 %v282
    %440 = vmatpush1.msra.mxu0 %v281
    %441 = vmatprep.subr.mxu0 %v307
    %442 = vmatpush1.msra.mxu0 %v306
    %443 = vmatprep.subr.mxu0 %v326
    %444 = vmatpush1.msra.mxu0 %v325
    %445 = vmatprep.subr.mxu0 %v353
    %446 = vmatpush1.msra.mxu0 %v352
    %447 = vmatprep.subr.mxu0 0.0
    %448 = vmatpush1.msra.mxu0 0.0
    %449 = vmatprep.subr.mxu0 0.0
    %450 = vmatpush1.msra.mxu0 0.0
    %451 = vmatprep.subr.mxu0 0.0
    %452 = vmatpush1.msra.mxu0 0.0
    %453 = vmatprep.subr.mxu0 0.0
    %454 = vmatpush1.msra.mxu0 0.0
    %455 = vmatprep.subr.mxu0 0.0
    %456 = vmatpush1.msra.mxu0 0.0
    %457 = vmatprep.subr.mxu0 0.0
    %458 = vmatpush1.msra.mxu0 0.0
    %459 = vmatprep.subr.mxu0 0.0
    %460 = vmatpush1.msra.mxu0 0.0
    %461 = vmatprep.subr.mxu0 0.0
    %462 = vmatpush1.msra.mxu0 0.0
    %463 = vmatprep.subr.mxu0 0.0
    %464 = vmatpush1.msra.mxu0 0.0
    %465 = vmatprep.subr.mxu0 0.0
    %466 = vmatpush1.msra.mxu0 0.0
    %467 = vmatprep.subr.mxu0 0.0
    %468 = vmatpush1.msra.mxu0 0.0
    %469 = vmatprep.subr.mxu0 0.0
    %470 = vmatpush1.msra.mxu0 0.0
    %471 = vmatprep.subr.mxu0 0.0
    %472 = vmatpush1.msra.mxu0 0.0
    %473 = vmatprep.subr.mxu0 0.0
    %474 = vmatpush1.msra.mxu0 0.0
    %475 = vmatprep.subr.mxu0 0.0
    %476 = vmatpush1.msra.mxu0 0.0
    %477 = vmatprep.subr.mxu0 0.0
    %478 = vmatpush1.msra.mxu0 0.0
    %479 = vmatprep.subr.mxu0 0.0
    %480 = vmatpush1.msra.mxu0 0.0
    %481 = vmatprep.subr.mxu0 0.0
    %482 = vmatpush1.msra.mxu0 0.0
    %483 = vmatprep.subr.mxu0 0.0
    %484 = vmatpush1.msra.mxu0 0.0
    %485 = vmatprep.subr.mxu0 0.0
    %486 = vmatpush1.msra.mxu0 0.0
    %487 = vmatprep.subr.mxu0 0.0
    %488 = vmatpush1.msra.mxu0 0.0
    %489 = vmatprep.subr.mxu0 0.0
    %490 = vmatpush1.msra.mxu0 0.0
    %491 = vmatprep.subr.mxu0 0.0
    %492 = vmatpush1.msra.mxu0 0.0
    %493 = vmatprep.mubr.f32.mxu0 0.0
    %494 = vmatmul.mubr.f32.gmra.mrb[0].mxu0 %v356
    %v495 = vpop.f32.mrb[0].mxu0
    %v496 = vadd.f32 0.0, %v495
    %v497 = vpop.f32.mrb[0].mxu0
    %v498 = vadd.f32 0.0, %v497
    %499 = vdwg.mxu0
    %v500 = vadd.f32 %v425, %v427
    %v501 = vadd.f32 %v500, %v496
    %v502 = vadd.f32 %v501, %v498
    %503 = vadd.xlane.f32.xlu0 %v502
    %v504 = vpop.xlane.xlu0 %503
    %v505 = vmul.f32 %v504, 0.001953125
    %v506 = vmul.f32 %v425, %v425
    %v507 = vmul.f32 %v427, %v427
    %v508 = vmul.f32 %v496, %v496
    %v509 = vmul.f32 %v498, %v498
    %v510 = vadd.f32 %v506, %v507
    %v511 = vadd.f32 %v510, %v508
    %v512 = vadd.f32 %v511, %v509
    %513 = vadd.xlane.f32.xlu0 %v512
    %v514 = vpop.xlane.xlu0 %513
    %v515 = vmul.f32 %v514, 0.001953125
    %v516 = vmul.f32 %v505, %v505
    %v517 = vsub.f32 %v515, %v516
    %v518 = vmax.f32 %v517, 0.0
    %v519 = vadd.f32 %v518, 1e-05
    %v520 = vrsqrt.pop %v519
    %v521 = vsub.f32 %v425, %v505
    %v522 = vsub.f32 %v427, %v505
    %v523 = vsub.f32 %v496, %v505
    %v524 = vsub.f32 %v498, %v505
    %v525 = vmul.f32 %v521, %v520
    %v526 = vmul.f32 %v522, %v520
    %v527 = vmul.f32 %v523, %v520
    %v528 = vmul.f32 %v524, %v520
    %v529 = vmax.f32 %v525, 0.0
    %v530 = vmax.f32 %v526, 0.0
    %v531 = vmax.f32 %v527, 0.0
    %v532 = vmax.f32 %v528, 0.0
    %533 = vst [vmem:[#allocation3 + $0x8] sm:$0xff] %v529
    %534 = vst [vmem:[#allocation3 + $0x10] sm:$0xff] %v530
    %s535 = scalar_lea.vmem [#allocation3], 32
    %536 = vst [vmem:[%s535 + $0x8] sm:$0xff] %v531
    %537 = vst [vmem:[%s535 + $0x10] sm:$0xff] %v532
    %v538 = vld [vmem:[#allocation9] sm:$0xff]
    %v539 = vld [vmem:[#allocation3] sm:$0xff]
    %v540 = vld [vmem:[#allocation3 + $0x8] sm:$0xff]
    %v541 = vld [vmem:[#allocation3 + $0x10] sm:$0xff]
    %v542 = vld [vmem:[%s535] sm:$0xff]
    %v543 = vld [vmem:[%s535 + $0x8] sm:$0xff]
    %v544 = vld [vmem:[%s535 + $0x10] sm:$0xff]
    %548 = vrot.lane.b32.xlu0 %v539, 17
    %v549 = vpop.permute.xlu0 %548
    %550 = vrot.lane.b32.xlu0 %v540, 17
    %v551 = vpop.permute.xlu0 %550
    %552 = vrot.lane.b32.xlu0 %v541, 17
    %v553 = vpop.permute.xlu0 %552
    %v554 = vsel %vm116, %v549, %v551
    %v555 = vsel %vm116, %v551, %v553
    %561 = vrot.lane.b32.xlu0 %v542, 17
    %v562 = vpop.permute.xlu0 %561
    %563 = vrot.lane.b32.xlu0 %v543, 17
    %v564 = vpop.permute.xlu0 %563
    %565 = vrot.lane.b32.xlu0 %v544, 17
    %v566 = vpop.permute.xlu0 %565
    %v567 = vsel %vm116, %v562, %v564
    %v568 = vsel %vm116, %v564, %v566
    %v571 = vld [vmem:[#allocation10] ss:$4 sm:$0xf]
    %v573 = vlaneseq
    %v574 = vshrl.u32 %v573, 7
    %v575 = vsub.s32 0, %v574
    %v576 = vrot.slane %v571, %v575
    %v577 = vlaneseq
    %v578 = vshrl.u32 %v577, 7
    %v579 = vsub.s32 1, %v578
    %v580 = vrot.slane %v571, %v579
    %v581 = vlaneseq
    %v582 = vshrl.u32 %v581, 7
    %v583 = vsub.s32 2, %v582
    %v584 = vrot.slane %v571, %v583
    %v585 = vlaneseq
    %v586 = vshrl.u32 %v585, 7
    %v587 = vsub.s32 3, %v586
    %v588 = vrot.slane %v571, %v587
    %v593 = vmul.f32 %v554, %v576
    %v594 = vmul.f32 %v555, %v580
    %v595 = vmul.f32 %v567, %v584
    %v596 = vmul.f32 %v568, %v588
    %597 = vrot.lane.b32.xlu0 %v539, 16
    %v598 = vpop.permute.xlu0 %597
    %599 = vrot.lane.b32.xlu0 %v540, 16
    %v600 = vpop.permute.xlu0 %599
    %601 = vrot.lane.b32.xlu0 %v541, 16
    %v602 = vpop.permute.xlu0 %601
    %v603 = vsel %vm166, %v598, %v600
    %v604 = vsel %vm166, %v600, %v602
    %607 = vrot.lane.b32.xlu0 %v542, 16
    %v608 = vpop.permute.xlu0 %607
    %609 = vrot.lane.b32.xlu0 %v543, 16
    %v610 = vpop.permute.xlu0 %609
    %611 = vrot.lane.b32.xlu0 %v544, 16
    %v612 = vpop.permute.xlu0 %611
    %v613 = vsel %vm166, %v608, %v610
    %v614 = vsel %vm166, %v610, %v612
    %617 = vrot.lane.b32.xlu0 %v539, 15
    %v618 = vpop.permute.xlu0 %617
    %619 = vrot.lane.b32.xlu0 %v540, 15
    %v620 = vpop.permute.xlu0 %619
    %621 = vrot.lane.b32.xlu0 %v541, 15
    %v622 = vpop.permute.xlu0 %621
    %v623 = vsel %vm187, %v618, %v620
    %v624 = vsel %vm187, %v620, %v622
    %627 = vrot.lane.b32.xlu0 %v542, 15
    %v628 = vpop.permute.xlu0 %627
    %629 = vrot.lane.b32.xlu0 %v543, 15
    %v630 = vpop.permute.xlu0 %629
    %631 = vrot.lane.b32.xlu0 %v544, 15
    %v632 = vpop.permute.xlu0 %631
    %v633 = vsel %vm187, %v628, %v630
    %v634 = vsel %vm187, %v630, %v632
    %v637 = vld [vmem:[%s202] ss:$4 sm:$0xf]
    %v639 = vlaneseq
    %v640 = vshrl.u32 %v639, 7
    %v641 = vsub.s32 0, %v640
    %v642 = vrot.slane %v637, %v641
    %v643 = vlaneseq
    %v644 = vshrl.u32 %v643, 7
    %v645 = vsub.s32 1, %v644
    %v646 = vrot.slane %v637, %v645
    %v647 = vlaneseq
    %v648 = vshrl.u32 %v647, 7
    %v649 = vsub.s32 2, %v648
    %v650 = vrot.slane %v637, %v649
    %v651 = vlaneseq
    %v652 = vshrl.u32 %v651, 7
    %v653 = vsub.s32 3, %v652
    %v654 = vrot.slane %v637, %v653
    %v659 = vmul.f32 %v623, %v642
    %v660 = vmul.f32 %v624, %v646
    %v661 = vmul.f32 %v633, %v650
    %v662 = vmul.f32 %v634, %v654
    %663 = vrot.lane.b32.xlu0 %v539, 1
    %v664 = vpop.permute.xlu0 %663
    %665 = vrot.lane.b32.xlu0 %v540, 1
    %v666 = vpop.permute.xlu0 %665
    %667 = vrot.lane.b32.xlu0 %v541, 1
    %v668 = vpop.permute.xlu0 %667
    %v669 = vsel %vm235, %v664, %v666
    %v670 = vsel %vm235, %v666, %v668
    %673 = vrot.lane.b32.xlu0 %v542, 1
    %v674 = vpop.permute.xlu0 %673
    %675 = vrot.lane.b32.xlu0 %v543, 1
    %v676 = vpop.permute.xlu0 %675
    %677 = vrot.lane.b32.xlu0 %v544, 1
    %v678 = vpop.permute.xlu0 %677
    %v679 = vsel %vm235, %v674, %v676
    %v680 = vsel %vm235, %v676, %v678
    %v683 = vmul.f32 %v669, %v576
    %v684 = vmul.f32 %v670, %v580
    %v685 = vmul.f32 %v679, %v584
    %v686 = vmul.f32 %v680, %v588
    %v687 = vld [vmem:[#allocation3 + $0x18] sm:$0xff]
    %v688 = vld [vmem:[%s535 + $0x18] sm:$0xff]
    %690 = vrot.lane.b32.xlu0 %v540, 127
    %v691 = vpop.permute.xlu0 %690
    %692 = vrot.lane.b32.xlu0 %v541, 127
    %v693 = vpop.permute.xlu0 %692
    %694 = vrot.lane.b32.xlu0 %v687, 127
    %v695 = vpop.permute.xlu0 %694
    %v696 = vsel %vm263, %v691, %v693
    %v697 = vsel %vm263, %v693, %v695
    %701 = vrot.lane.b32.xlu0 %v543, 127
    %v702 = vpop.permute.xlu0 %701
    %703 = vrot.lane.b32.xlu0 %v544, 127
    %v704 = vpop.permute.xlu0 %703
    %705 = vrot.lane.b32.xlu0 %v688, 127
    %v706 = vpop.permute.xlu0 %705
    %v707 = vsel %vm263, %v702, %v704
    %v708 = vsel %vm263, %v704, %v706
    %v711 = vmul.f32 %v696, %v642
    %v712 = vmul.f32 %v697, %v646
    %v713 = vmul.f32 %v707, %v650
    %v714 = vmul.f32 %v708, %v654
    %715 = vrot.lane.b32.xlu0 %v540, 113
    %v716 = vpop.permute.xlu0 %715
    %717 = vrot.lane.b32.xlu0 %v541, 113
    %v718 = vpop.permute.xlu0 %717
    %719 = vrot.lane.b32.xlu0 %v687, 113
    %v720 = vpop.permute.xlu0 %719
    %v721 = vsel %vm289, %v716, %v718
    %v722 = vsel %vm289, %v718, %v720
    %725 = vrot.lane.b32.xlu0 %v543, 113
    %v726 = vpop.permute.xlu0 %725
    %727 = vrot.lane.b32.xlu0 %v544, 113
    %v728 = vpop.permute.xlu0 %727
    %729 = vrot.lane.b32.xlu0 %v688, 113
    %v730 = vpop.permute.xlu0 %729
    %v731 = vsel %vm289, %v726, %v728
    %v732 = vsel %vm289, %v728, %v730
    %v735 = vmul.f32 %v721, %v576
    %v736 = vmul.f32 %v722, %v580
    %v737 = vmul.f32 %v731, %v584
    %v738 = vmul.f32 %v732, %v588
    %739 = vrot.lane.b32.xlu0 %v540, 112
    %v740 = vpop.permute.xlu0 %739
    %741 = vrot.lane.b32.xlu0 %v541, 112
    %v742 = vpop.permute.xlu0 %741
    %743 = vrot.lane.b32.xlu0 %v687, 112
    %v744 = vpop.permute.xlu0 %743
    %v745 = vsel %vm314, %v740, %v742
    %v746 = vsel %vm314, %v742, %v744
    %749 = vrot.lane.b32.xlu0 %v543, 112
    %v750 = vpop.permute.xlu0 %749
    %751 = vrot.lane.b32.xlu0 %v544, 112
    %v752 = vpop.permute.xlu0 %751
    %753 = vrot.lane.b32.xlu0 %v688, 112
    %v754 = vpop.permute.xlu0 %753
    %v755 = vsel %vm314, %v750, %v752
    %v756 = vsel %vm314, %v752, %v754
    %759 = vrot.lane.b32.xlu0 %v540, 111
    %v760 = vpop.permute.xlu0 %759
    %761 = vrot.lane.b32.xlu0 %v541, 111
    %v762 = vpop.permute.xlu0 %761
    %763 = vrot.lane.b32.xlu0 %v687, 111
    %v764 = vpop.permute.xlu0 %763
    %v765 = vsel %vm335, %v760, %v762
    %v766 = vsel %vm335, %v762, %v764
    %769 = vrot.lane.b32.xlu0 %v543, 111
    %v770 = vpop.permute.xlu0 %769
    %771 = vrot.lane.b32.xlu0 %v544, 111
    %v772 = vpop.permute.xlu0 %771
    %773 = vrot.lane.b32.xlu0 %v688, 111
    %v774 = vpop.permute.xlu0 %773
    %v775 = vsel %vm335, %v770, %v772
    %v776 = vsel %vm335, %v772, %v774
    %v779 = vmul.f32 %v765, %v642
    %v780 = vmul.f32 %v766, %v646
    %v781 = vmul.f32 %v775, %v650
    %v782 = vmul.f32 %v776, %v654
    %v784 = vsel %vm354, %v538, 0
    %786 = vmatprep.subr.mxu0 %v594
    %787 = vmatpush1.msra.mxu0 %v593
    %788 = vmatprep.subr.mxu0 %v604
    %789 = vmatpush1.msra.mxu0 %v603
    %790 = vmatprep.subr.mxu0 %v660
    %791 = vmatpush1.msra.mxu0 %v659
    %792 = vmatprep.subr.mxu0 %v684
    %793 = vmatpush1.msra.mxu0 %v683
    %794 = vmatprep.subr.mxu0 %v541
    %795 = vmatpush1.msra.mxu0 %v540
    %796 = vmatprep.subr.mxu0 %v712
    %797 = vmatpush1.msra.mxu0 %v711
    %798 = vmatprep.subr.mxu0 %v736
    %799 = vmatpush1.msra.mxu0 %v735
    %800 = vmatprep.subr.mxu0 %v746
    %801 = vmatpush1.msra.mxu0 %v745
    %802 = vmatprep.subr.mxu0 %v780
    %803 = vmatpush1.msra.mxu0 %v779
    %804 = vmatprep.subr.mxu0 0.0
    %805 = vmatpush1.msra.mxu0 0.0
    %806 = vmatprep.subr.mxu0 0.0
    %807 = vmatpush1.msra.mxu0 0.0
    %808 = vmatprep.subr.mxu0 0.0
    %809 = vmatpush1.msra.mxu0 0.0
    %810 = vmatprep.subr.mxu0 0.0
    %811 = vmatpush1.msra.mxu0 0.0
    %812 = vmatprep.subr.mxu0 0.0
    %813 = vmatpush1.msra.mxu0 0.0
    %814 = vmatprep.subr.mxu0 0.0
    %815 = vmatpush1.msra.mxu0 0.0
    %816 = vmatprep.subr.mxu0 0.0
    %817 = vmatpush1.msra.mxu0 0.0
    %818 = vmatprep.subr.mxu0 0.0
    %819 = vmatpush1.msra.mxu0 0.0
    %820 = vmatprep.subr.mxu0 0.0
    %821 = vmatpush1.msra.mxu0 0.0
    %822 = vmatprep.subr.mxu0 0.0
    %823 = vmatpush1.msra.mxu0 0.0
    %824 = vmatprep.subr.mxu0 0.0
    %825 = vmatpush1.msra.mxu0 0.0
    %826 = vmatprep.subr.mxu0 0.0
    %827 = vmatpush1.msra.mxu0 0.0
    %828 = vmatprep.subr.mxu0 0.0
    %829 = vmatpush1.msra.mxu0 0.0
    %830 = vmatprep.subr.mxu0 0.0
    %831 = vmatpush1.msra.mxu0 0.0
    %832 = vmatprep.subr.mxu0 0.0
    %833 = vmatpush1.msra.mxu0 0.0
    %834 = vmatprep.subr.mxu0 0.0
    %835 = vmatpush1.msra.mxu0 0.0
    %836 = vmatprep.subr.mxu0 0.0
    %837 = vmatpush1.msra.mxu0 0.0
    %838 = vmatprep.subr.mxu0 0.0
    %839 = vmatpush1.msra.mxu0 0.0
    %840 = vmatprep.subr.mxu0 0.0
    %841 = vmatpush1.msra.mxu0 0.0
    %842 = vmatprep.subr.mxu0 0.0
    %843 = vmatpush1.msra.mxu0 0.0
    %844 = vmatprep.subr.mxu0 0.0
    %845 = vmatpush1.msra.mxu0 0.0
    %846 = vmatprep.subr.mxu0 0.0
    %847 = vmatpush1.msra.mxu0 0.0
    %848 = vmatprep.subr.mxu0 0.0
    %849 = vmatpush1.msra.mxu0 0.0
    %850 = vmatprep.mubr.f32.mxu0 0.0
    %851 = vmatmul.mubr.f32.gmra.mrb[0].mxu0 %v784
    %v852 = vpop.f32.mrb[0].mxu0
    %v853 = vadd.f32 0.0, %v852
    %v854 = vpop.f32.mrb[0].mxu0
    %v855 = vadd.f32 0.0, %v854
    %856 = vdwg.mxu0
    %857 = vmatprep.subr.mxu0 %v596
    %858 = vmatpush1.msra.mxu0 %v595
    %859 = vmatprep.subr.mxu0 %v614
    %860 = vmatpush1.msra.mxu0 %v613
    %861 = vmatprep.subr.mxu0 %v662
    %862 = vmatpush1.msra.mxu0 %v661
    %863 = vmatprep.subr.mxu0 %v686
    %864 = vmatpush1.msra.mxu0 %v685
    %865 = vmatprep.subr.mxu0 %v544
    %866 = vmatpush1.msra.mxu0 %v543
    %867 = vmatprep.subr.mxu0 %v714
    %868 = vmatpush1.msra.mxu0 %v713
    %869 = vmatprep.subr.mxu0 %v738
    %870 = vmatpush1.msra.mxu0 %v737
    %871 = vmatprep.subr.mxu0 %v756
    %872 = vmatpush1.msra.mxu0 %v755
    %873 = vmatprep.subr.mxu0 %v782
    %874 = vmatpush1.msra.mxu0 %v781
    %875 = vmatprep.subr.mxu0 0.0
    %876 = vmatpush1.msra.mxu0 0.0
    %877 = vmatprep.subr.mxu0 0.0
    %878 = vmatpush1.msra.mxu0 0.0
    %879 = vmatprep.subr.mxu0 0.0
    %880 = vmatpush1.msra.mxu0 0.0
    %881 = vmatprep.subr.mxu0 0.0
    %882 = vmatpush1.msra.mxu0 0.0
    %883 = vmatprep.subr.mxu0 0.0
    %884 = vmatpush1.msra.mxu0 0.0
    %885 = vmatprep.subr.mxu0 0.0
    %886 = vmatpush1.msra.mxu0 0.0
    %887 = vmatprep.subr.mxu0 0.0
    %888 = vmatpush1.msra.mxu0 0.0
    %889 = vmatprep.subr.mxu0 0.0
    %890 = vmatpush1.msra.mxu0 0.0
    %891 = vmatprep.subr.mxu0 0.0
    %892 = vmatpush1.msra.mxu0 0.0
    %893 = vmatprep.subr.mxu0 0.0
    %894 = vmatpush1.msra.mxu0 0.0
    %895 = vmatprep.subr.mxu0 0.0
    %896 = vmatpush1.msra.mxu0 0.0
    %897 = vmatprep.subr.mxu0 0.0
    %898 = vmatpush1.msra.mxu0 0.0
    %899 = vmatprep.subr.mxu0 0.0
    %900 = vmatpush1.msra.mxu0 0.0
    %901 = vmatprep.subr.mxu0 0.0
    %902 = vmatpush1.msra.mxu0 0.0
    %903 = vmatprep.subr.mxu0 0.0
    %904 = vmatpush1.msra.mxu0 0.0
    %905 = vmatprep.subr.mxu0 0.0
    %906 = vmatpush1.msra.mxu0 0.0
    %907 = vmatprep.subr.mxu0 0.0
    %908 = vmatpush1.msra.mxu0 0.0
    %909 = vmatprep.subr.mxu0 0.0
    %910 = vmatpush1.msra.mxu0 0.0
    %911 = vmatprep.subr.mxu0 0.0
    %912 = vmatpush1.msra.mxu0 0.0
    %913 = vmatprep.subr.mxu0 0.0
    %914 = vmatpush1.msra.mxu0 0.0
    %915 = vmatprep.subr.mxu0 0.0
    %916 = vmatpush1.msra.mxu0 0.0
    %917 = vmatprep.subr.mxu0 0.0
    %918 = vmatpush1.msra.mxu0 0.0
    %919 = vmatprep.subr.mxu0 0.0
    %920 = vmatpush1.msra.mxu0 0.0
    %921 = vmatprep.mubr.f32.mxu0 0.0
    %922 = vmatmul.mubr.f32.gmra.mrb[0].mxu0 %v784
    %v923 = vpop.f32.mrb[0].mxu0
    %v924 = vadd.f32 0.0, %v923
    %v925 = vpop.f32.mrb[0].mxu0
    %v926 = vadd.f32 0.0, %v925
    %927 = vdwg.mxu0
    %v928 = vadd.f32 %v853, %v855
    %v929 = vadd.f32 %v928, %v924
    %v930 = vadd.f32 %v929, %v926
    %931 = vadd.xlane.f32.xlu0 %v930
    %v932 = vpop.xlane.xlu0 %931
    %v933 = vmul.f32 %v932, 0.001953125
    %v934 = vmul.f32 %v853, %v853
    %v935 = vmul.f32 %v855, %v855
    %v936 = vmul.f32 %v924, %v924
    %v937 = vmul.f32 %v926, %v926
    %v938 = vadd.f32 %v934, %v935
    %v939 = vadd.f32 %v938, %v936
    %v940 = vadd.f32 %v939, %v937
    %941 = vadd.xlane.f32.xlu0 %v940
    %v942 = vpop.xlane.xlu0 %941
    %v943 = vmul.f32 %v942, 0.001953125
    %v944 = vmul.f32 %v933, %v933
    %v945 = vsub.f32 %v943, %v944
    %v946 = vmax.f32 %v945, 0.0
    %v947 = vadd.f32 %v946, 1e-05
    %v948 = vrsqrt.pop %v947
    %v949 = vsub.f32 %v853, %v933
    %v950 = vsub.f32 %v855, %v933
    %v951 = vsub.f32 %v924, %v933
    %v952 = vsub.f32 %v926, %v933
    %v953 = vmul.f32 %v949, %v948
    %v954 = vmul.f32 %v950, %v948
    %v955 = vmul.f32 %v951, %v948
    %v956 = vmul.f32 %v952, %v948
    %v957 = vmax.f32 %v953, 0.0
    %v958 = vmax.f32 %v954, 0.0
    %v959 = vmax.f32 %v955, 0.0
    %v960 = vmax.f32 %v956, 0.0
    %v961 = vld [vmem:[#allocation12] sm:$0xff]
    %v962 = vld [vmem:[#allocation12 + $0x8] sm:$0xff]
    %v963 = vld [vmem:[#allocation12 + $0x10] sm:$0xff]
    %v964 = vld [vmem:[#allocation12 + $0x18] sm:$0xff]
    %v965 = vld [vmem:[#allocation12 + $0x20] sm:$0xff]
    %v966 = vld [vmem:[#allocation12 + $0x28] sm:$0xff]
    %v967 = vld [vmem:[#allocation12 + $0x30] sm:$0xff]
    %v968 = vld [vmem:[#allocation12 + $0x38] sm:$0xff]
    %v969 = vld [vmem:[#allocation12 + $0x40] sm:$0xff]
    %v970 = vld [vmem:[#allocation12 + $0x48] sm:$0xff]
    %v971 = vld [vmem:[#allocation12 + $0x50] sm:$0xff]
    %v972 = vld [vmem:[#allocation12 + $0x58] sm:$0xff]
    %v973 = vld [vmem:[#allocation12 + $0x60] sm:$0xff]
    %v974 = vld [vmem:[#allocation12 + $0x68] sm:$0xff]
    %v975 = vld [vmem:[#allocation12 + $0x70] sm:$0xff]
    %v976 = vld [vmem:[#allocation12 + $0x78] sm:$0xff]
    %v977 = vld [vmem:[#allocation12 + $0x80] sm:$0xff]
    %v978 = vld [vmem:[#allocation12 + $0x88] sm:$0xff]
    %v979 = vld [vmem:[#allocation12 + $0x90] sm:$0xff]
    %v980 = vld [vmem:[#allocation12 + $0x98] sm:$0xff]
    %v981 = vld [vmem:[#allocation12 + $0xa0] sm:$0xff]
    %v982 = vld [vmem:[#allocation12 + $0xa8] sm:$0xff]
    %v983 = vld [vmem:[#allocation12 + $0xb0] sm:$0xff]
    %v984 = vld [vmem:[#allocation12 + $0xb8] sm:$0xff]
    %v985 = vld [vmem:[#allocation12 + $0xc0] sm:$0xff]
    %v986 = vld [vmem:[#allocation12 + $0xc8] sm:$0xff]
    %v987 = vld [vmem:[#allocation12 + $0xd0] sm:$0xff]
    %v988 = vld [vmem:[#allocation12 + $0xd8] sm:$0xff]
    %v989 = vld [vmem:[#allocation12 + $0xe0] sm:$0xff]
    %v990 = vld [vmem:[#allocation12 + $0xe8] sm:$0xff]
    %v991 = vld [vmem:[#allocation12 + $0xf0] sm:$0xff]
    %v992 = vld [vmem:[#allocation12 + $0xf8] sm:$0xff]
    %v993 = vld [vmem:[#allocation12 + $0x100] sm:$0xff]
    %v994 = vld [vmem:[#allocation12 + $0x108] sm:$0xff]
    %v995 = vld [vmem:[#allocation12 + $0x110] sm:$0xff]
    %v996 = vld [vmem:[#allocation12 + $0x118] sm:$0xff]
    %v997 = vld [vmem:[#allocation12 + $0x120] sm:$0xff]
    %v998 = vld [vmem:[#allocation12 + $0x128] sm:$0xff]
    %v999 = vld [vmem:[#allocation12 + $0x130] sm:$0xff]
    %v1000 = vld [vmem:[#allocation12 + $0x138] sm:$0xff]
    %v1001 = vld [vmem:[#allocation12 + $0x140] sm:$0xff]
    %v1002 = vld [vmem:[#allocation12 + $0x148] sm:$0xff]
    %v1003 = vld [vmem:[#allocation12 + $0x150] sm:$0xff]
    %v1004 = vld [vmem:[#allocation12 + $0x158] sm:$0xff]
    %v1005 = vld [vmem:[#allocation12 + $0x160] sm:$0xff]
    %v1006 = vld [vmem:[#allocation12 + $0x168] sm:$0xff]
    %v1007 = vld [vmem:[#allocation12 + $0x170] sm:$0xff]
    %v1008 = vld [vmem:[#allocation12 + $0x178] sm:$0xff]
    %v1009 = vld [vmem:[#allocation12 + $0x180] sm:$0xff]
    %v1010 = vld [vmem:[#allocation12 + $0x188] sm:$0xff]
    %v1011 = vld [vmem:[#allocation12 + $0x190] sm:$0xff]
    %v1012 = vld [vmem:[#allocation12 + $0x198] sm:$0xff]
    %v1013 = vld [vmem:[#allocation12 + $0x1a0] sm:$0xff]
    %v1014 = vld [vmem:[#allocation12 + $0x1a8] sm:$0xff]
    %v1015 = vld [vmem:[#allocation12 + $0x1b0] sm:$0xff]
    %v1016 = vld [vmem:[#allocation12 + $0x1b8] sm:$0xff]
    %v1017 = vld [vmem:[#allocation12 + $0x1c0] sm:$0xff]
    %v1018 = vld [vmem:[#allocation12 + $0x1c8] sm:$0xff]
    %v1019 = vld [vmem:[#allocation12 + $0x1d0] sm:$0xff]
    %v1020 = vld [vmem:[#allocation12 + $0x1d8] sm:$0xff]
    %v1021 = vld [vmem:[#allocation12 + $0x1e0] sm:$0xff]
    %v1022 = vld [vmem:[#allocation12 + $0x1e8] sm:$0xff]
    %v1023 = vld [vmem:[#allocation12 + $0x1f0] sm:$0xff]
    %v1024 = vld [vmem:[#allocation12 + $0x1f8] sm:$0xff]
    %v1025 = vld [vmem:[#allocation12 + $0x200] sm:$0xff]
    %v1026 = vld [vmem:[#allocation12 + $0x208] sm:$0xff]
    %v1027 = vld [vmem:[#allocation12 + $0x210] sm:$0xff]
    %v1028 = vld [vmem:[#allocation12 + $0x218] sm:$0xff]
    %v1029 = vld [vmem:[#allocation12 + $0x220] sm:$0xff]
    %v1030 = vld [vmem:[#allocation12 + $0x228] sm:$0xff]
    %v1031 = vld [vmem:[#allocation12 + $0x230] sm:$0xff]
    %v1032 = vld [vmem:[#allocation12 + $0x238] sm:$0xff]
    %v1033 = vld [vmem:[#allocation12 + $0x240] sm:$0xff]
    %v1034 = vld [vmem:[#allocation12 + $0x248] sm:$0xff]
    %v1035 = vld [vmem:[#allocation12 + $0x250] sm:$0xff]
    %v1036 = vld [vmem:[#allocation12 + $0x258] sm:$0xff]
    %v1037 = vld [vmem:[#allocation12 + $0x260] sm:$0xff]
    %v1038 = vld [vmem:[#allocation12 + $0x268] sm:$0xff]
    %v1039 = vld [vmem:[#allocation12 + $0x270] sm:$0xff]
    %v1040 = vld [vmem:[#allocation12 + $0x278] sm:$0xff]
    %v1041 = vld [vmem:[#allocation12 + $0x280] sm:$0xff]
    %v1042 = vld [vmem:[#allocation12 + $0x288] sm:$0xff]
    %v1043 = vld [vmem:[#allocation12 + $0x290] sm:$0xff]
    %v1044 = vld [vmem:[#allocation12 + $0x298] sm:$0xff]
    %v1045 = vld [vmem:[#allocation12 + $0x2a0] sm:$0xff]
    %v1046 = vld [vmem:[#allocation12 + $0x2a8] sm:$0xff]
    %v1047 = vld [vmem:[#allocation12 + $0x2b0] sm:$0xff]
    %v1048 = vld [vmem:[#allocation12 + $0x2b8] sm:$0xff]
    %v1049 = vld [vmem:[#allocation12 + $0x2c0] sm:$0xff]
    %v1050 = vld [vmem:[#allocation12 + $0x2c8] sm:$0xff]
    %v1051 = vld [vmem:[#allocation12 + $0x2d0] sm:$0xff]
    %v1052 = vld [vmem:[#allocation12 + $0x2d8] sm:$0xff]
    %v1053 = vld [vmem:[#allocation12 + $0x2e0] sm:$0xff]
    %v1054 = vld [vmem:[#allocation12 + $0x2e8] sm:$0xff]
    %v1055 = vld [vmem:[#allocation12 + $0x2f0] sm:$0xff]
    %v1056 = vld [vmem:[#allocation12 + $0x2f8] sm:$0xff]
    %v1057 = vld [vmem:[#allocation12 + $0x300] sm:$0xff]
    %v1058 = vld [vmem:[#allocation12 + $0x308] sm:$0xff]
    %v1059 = vld [vmem:[#allocation12 + $0x310] sm:$0xff]
    %v1060 = vld [vmem:[#allocation12 + $0x318] sm:$0xff]
    %v1061 = vld [vmem:[#allocation12 + $0x320] sm:$0xff]
    %v1062 = vld [vmem:[#allocation12 + $0x328] sm:$0xff]
    %v1063 = vld [vmem:[#allocation12 + $0x330] sm:$0xff]
    %v1064 = vld [vmem:[#allocation12 + $0x338] sm:$0xff]
    %v1065 = vld [vmem:[#allocation12 + $0x340] sm:$0xff]
    %v1066 = vld [vmem:[#allocation12 + $0x348] sm:$0xff]
    %v1067 = vld [vmem:[#allocation12 + $0x350] sm:$0xff]
    %v1068 = vld [vmem:[#allocation12 + $0x358] sm:$0xff]
    %v1069 = vld [vmem:[#allocation12 + $0x360] sm:$0xff]
    %v1070 = vld [vmem:[#allocation12 + $0x368] sm:$0xff]
    %v1071 = vld [vmem:[#allocation12 + $0x370] sm:$0xff]
    %v1072 = vld [vmem:[#allocation12 + $0x378] sm:$0xff]
    %v1073 = vld [vmem:[#allocation12 + $0x380] sm:$0xff]
    %v1074 = vld [vmem:[#allocation12 + $0x388] sm:$0xff]
    %v1075 = vld [vmem:[#allocation12 + $0x390] sm:$0xff]
    %v1076 = vld [vmem:[#allocation12 + $0x398] sm:$0xff]
    %v1077 = vld [vmem:[#allocation12 + $0x3a0] sm:$0xff]
    %v1078 = vld [vmem:[#allocation12 + $0x3a8] sm:$0xff]
    %v1079 = vld [vmem:[#allocation12 + $0x3b0] sm:$0xff]
    %v1080 = vld [vmem:[#allocation12 + $0x3b8] sm:$0xff]
    %v1081 = vld [vmem:[#allocation12 + $0x3c0] sm:$0xff]
    %v1082 = vld [vmem:[#allocation12 + $0x3c8] sm:$0xff]
    %v1083 = vld [vmem:[#allocation12 + $0x3d0] sm:$0xff]
    %v1084 = vld [vmem:[#allocation12 + $0x3d8] sm:$0xff]
    %v1085 = vld [vmem:[#allocation12 + $0x3e0] sm:$0xff]
    %v1086 = vld [vmem:[#allocation12 + $0x3e8] sm:$0xff]
    %v1087 = vld [vmem:[#allocation12 + $0x3f0] sm:$0xff]
    %v1088 = vld [vmem:[#allocation12 + $0x3f8] sm:$0xff]
    %v1089 = vld [vmem:[#allocation12 + $0x400] sm:$0xff]
    %v1090 = vld [vmem:[#allocation12 + $0x408] sm:$0xff]
    %v1091 = vld [vmem:[#allocation12 + $0x410] sm:$0xff]
    %v1092 = vld [vmem:[#allocation12 + $0x418] sm:$0xff]
    %v1093 = vld [vmem:[#allocation12 + $0x420] sm:$0xff]
    %v1094 = vld [vmem:[#allocation12 + $0x428] sm:$0xff]
    %v1095 = vld [vmem:[#allocation12 + $0x430] sm:$0xff]
    %v1096 = vld [vmem:[#allocation12 + $0x438] sm:$0xff]
    %v1097 = vld [vmem:[#allocation12 + $0x440] sm:$0xff]
    %v1098 = vld [vmem:[#allocation12 + $0x448] sm:$0xff]
    %v1099 = vld [vmem:[#allocation12 + $0x450] sm:$0xff]
    %v1100 = vld [vmem:[#allocation12 + $0x458] sm:$0xff]
    %v1101 = vld [vmem:[#allocation12 + $0x460] sm:$0xff]
    %v1102 = vld [vmem:[#allocation12 + $0x468] sm:$0xff]
    %v1103 = vld [vmem:[#allocation12 + $0x470] sm:$0xff]
    %v1104 = vld [vmem:[#allocation12 + $0x478] sm:$0xff]
    %v1105 = vld [vmem:[#allocation12 + $0x480] sm:$0xff]
    %v1106 = vld [vmem:[#allocation12 + $0x488] sm:$0xff]
    %v1107 = vld [vmem:[#allocation12 + $0x490] sm:$0xff]
    %v1108 = vld [vmem:[#allocation12 + $0x498] sm:$0xff]
    %v1109 = vld [vmem:[#allocation12 + $0x4a0] sm:$0xff]
    %v1110 = vld [vmem:[#allocation12 + $0x4a8] sm:$0xff]
    %v1111 = vld [vmem:[#allocation12 + $0x4b0] sm:$0xff]
    %v1112 = vld [vmem:[#allocation12 + $0x4b8] sm:$0xff]
    %v1113 = vld [vmem:[#allocation12 + $0x4c0] sm:$0xff]
    %v1114 = vld [vmem:[#allocation12 + $0x4c8] sm:$0xff]
    %v1115 = vld [vmem:[#allocation12 + $0x4d0] sm:$0xff]
    %v1116 = vld [vmem:[#allocation12 + $0x4d8] sm:$0xff]
    %v1117 = vld [vmem:[#allocation12 + $0x4e0] sm:$0xff]
    %v1118 = vld [vmem:[#allocation12 + $0x4e8] sm:$0xff]
    %v1119 = vld [vmem:[#allocation12 + $0x4f0] sm:$0xff]
    %v1120 = vld [vmem:[#allocation12 + $0x4f8] sm:$0xff]
    %v1121 = vld [vmem:[#allocation12 + $0x500] sm:$0xff]
    %v1122 = vld [vmem:[#allocation12 + $0x508] sm:$0xff]
    %v1123 = vld [vmem:[#allocation12 + $0x510] sm:$0xff]
    %v1124 = vld [vmem:[#allocation12 + $0x518] sm:$0xff]
    %v1125 = vld [vmem:[#allocation12 + $0x520] sm:$0xff]
    %v1126 = vld [vmem:[#allocation12 + $0x528] sm:$0xff]
    %v1127 = vld [vmem:[#allocation12 + $0x530] sm:$0xff]
    %v1128 = vld [vmem:[#allocation12 + $0x538] sm:$0xff]
    %v1129 = vld [vmem:[#allocation12 + $0x540] sm:$0xff]
    %v1130 = vld [vmem:[#allocation12 + $0x548] sm:$0xff]
    %v1131 = vld [vmem:[#allocation12 + $0x550] sm:$0xff]
    %v1132 = vld [vmem:[#allocation12 + $0x558] sm:$0xff]
    %v1133 = vld [vmem:[#allocation12 + $0x560] sm:$0xff]
    %v1134 = vld [vmem:[#allocation12 + $0x568] sm:$0xff]
    %v1135 = vld [vmem:[#allocation12 + $0x570] sm:$0xff]
    %v1136 = vld [vmem:[#allocation12 + $0x578] sm:$0xff]
    %v1137 = vld [vmem:[#allocation12 + $0x580] sm:$0xff]
    %v1138 = vld [vmem:[#allocation12 + $0x588] sm:$0xff]
    %v1139 = vld [vmem:[#allocation12 + $0x590] sm:$0xff]
    %v1140 = vld [vmem:[#allocation12 + $0x598] sm:$0xff]
    %v1141 = vld [vmem:[#allocation12 + $0x5a0] sm:$0xff]
    %v1142 = vld [vmem:[#allocation12 + $0x5a8] sm:$0xff]
    %v1143 = vld [vmem:[#allocation12 + $0x5b0] sm:$0xff]
    %v1144 = vld [vmem:[#allocation12 + $0x5b8] sm:$0xff]
    %v1145 = vld [vmem:[#allocation12 + $0x5c0] sm:$0xff]
    %v1146 = vld [vmem:[#allocation12 + $0x5c8] sm:$0xff]
    %v1147 = vld [vmem:[#allocation12 + $0x5d0] sm:$0xff]
    %v1148 = vld [vmem:[#allocation12 + $0x5d8] sm:$0xff]
    %v1149 = vld [vmem:[#allocation12 + $0x5e0] sm:$0xff]
    %v1150 = vld [vmem:[#allocation12 + $0x5e8] sm:$0xff]
    %v1151 = vld [vmem:[#allocation12 + $0x5f0] sm:$0xff]
    %v1152 = vld [vmem:[#allocation12 + $0x5f8] sm:$0xff]
    %v1153 = vld [vmem:[#allocation12 + $0x600] sm:$0xff]
    %v1154 = vld [vmem:[#allocation12 + $0x608] sm:$0xff]
    %v1155 = vld [vmem:[#allocation12 + $0x610] sm:$0xff]
    %v1156 = vld [vmem:[#allocation12 + $0x618] sm:$0xff]
    %v1157 = vld [vmem:[#allocation12 + $0x620] sm:$0xff]
    %v1158 = vld [vmem:[#allocation12 + $0x628] sm:$0xff]
    %v1159 = vld [vmem:[#allocation12 + $0x630] sm:$0xff]
    %v1160 = vld [vmem:[#allocation12 + $0x638] sm:$0xff]
    %v1161 = vld [vmem:[#allocation12 + $0x640] sm:$0xff]
    %v1162 = vld [vmem:[#allocation12 + $0x648] sm:$0xff]
    %v1163 = vld [vmem:[#allocation12 + $0x650] sm:$0xff]
    %v1164 = vld [vmem:[#allocation12 + $0x658] sm:$0xff]
    %v1165 = vld [vmem:[#allocation12 + $0x660] sm:$0xff]
    %v1166 = vld [vmem:[#allocation12 + $0x668] sm:$0xff]
    %v1167 = vld [vmem:[#allocation12 + $0x670] sm:$0xff]
    %v1168 = vld [vmem:[#allocation12 + $0x678] sm:$0xff]
    %v1169 = vld [vmem:[#allocation12 + $0x680] sm:$0xff]
    %v1170 = vld [vmem:[#allocation12 + $0x688] sm:$0xff]
    %v1171 = vld [vmem:[#allocation12 + $0x690] sm:$0xff]
    %v1172 = vld [vmem:[#allocation12 + $0x698] sm:$0xff]
    %v1173 = vld [vmem:[#allocation12 + $0x6a0] sm:$0xff]
    %v1174 = vld [vmem:[#allocation12 + $0x6a8] sm:$0xff]
    %v1175 = vld [vmem:[#allocation12 + $0x6b0] sm:$0xff]
    %v1176 = vld [vmem:[#allocation12 + $0x6b8] sm:$0xff]
    %v1177 = vld [vmem:[#allocation12 + $0x6c0] sm:$0xff]
    %v1178 = vld [vmem:[#allocation12 + $0x6c8] sm:$0xff]
    %v1179 = vld [vmem:[#allocation12 + $0x6d0] sm:$0xff]
    %v1180 = vld [vmem:[#allocation12 + $0x6d8] sm:$0xff]
    %v1181 = vld [vmem:[#allocation12 + $0x6e0] sm:$0xff]
    %v1182 = vld [vmem:[#allocation12 + $0x6e8] sm:$0xff]
    %v1183 = vld [vmem:[#allocation12 + $0x6f0] sm:$0xff]
    %v1184 = vld [vmem:[#allocation12 + $0x6f8] sm:$0xff]
    %v1185 = vld [vmem:[#allocation12 + $0x700] sm:$0xff]
    %v1186 = vld [vmem:[#allocation12 + $0x708] sm:$0xff]
    %v1187 = vld [vmem:[#allocation12 + $0x710] sm:$0xff]
    %v1188 = vld [vmem:[#allocation12 + $0x718] sm:$0xff]
    %v1189 = vld [vmem:[#allocation12 + $0x720] sm:$0xff]
    %v1190 = vld [vmem:[#allocation12 + $0x728] sm:$0xff]
    %v1191 = vld [vmem:[#allocation12 + $0x730] sm:$0xff]
    %v1192 = vld [vmem:[#allocation12 + $0x738] sm:$0xff]
    %v1193 = vld [vmem:[#allocation12 + $0x740] sm:$0xff]
    %v1194 = vld [vmem:[#allocation12 + $0x748] sm:$0xff]
    %v1195 = vld [vmem:[#allocation12 + $0x750] sm:$0xff]
    %v1196 = vld [vmem:[#allocation12 + $0x758] sm:$0xff]
    %v1197 = vld [vmem:[#allocation12 + $0x760] sm:$0xff]
    %v1198 = vld [vmem:[#allocation12 + $0x768] sm:$0xff]
    %v1199 = vld [vmem:[#allocation12 + $0x770] sm:$0xff]
    %v1200 = vld [vmem:[#allocation12 + $0x778] sm:$0xff]
    %v1201 = vld [vmem:[#allocation12 + $0x780] sm:$0xff]
    %v1202 = vld [vmem:[#allocation12 + $0x788] sm:$0xff]
    %v1203 = vld [vmem:[#allocation12 + $0x790] sm:$0xff]
    %v1204 = vld [vmem:[#allocation12 + $0x798] sm:$0xff]
    %v1205 = vld [vmem:[#allocation12 + $0x7a0] sm:$0xff]
    %v1206 = vld [vmem:[#allocation12 + $0x7a8] sm:$0xff]
    %v1207 = vld [vmem:[#allocation12 + $0x7b0] sm:$0xff]
    %v1208 = vld [vmem:[#allocation12 + $0x7b8] sm:$0xff]
    %v1209 = vld [vmem:[#allocation12 + $0x7c0] sm:$0xff]
    %v1210 = vld [vmem:[#allocation12 + $0x7c8] sm:$0xff]
    %v1211 = vld [vmem:[#allocation12 + $0x7d0] sm:$0xff]
    %v1212 = vld [vmem:[#allocation12 + $0x7d8] sm:$0xff]
    %v1213 = vld [vmem:[#allocation12 + $0x7e0] sm:$0xff]
    %v1214 = vld [vmem:[#allocation12 + $0x7e8] sm:$0xff]
    %v1215 = vld [vmem:[#allocation12 + $0x7f0] sm:$0xff]
    %v1216 = vld [vmem:[#allocation12 + $0x7f8] sm:$0xff]
    %1217 = vmatprep.subr.mxu0 %v962
    %1218 = vmatpush1.msra.mxu0 %v961
    %1219 = vmatprep.subr.mxu0 %v966
    %1220 = vmatpush1.msra.mxu0 %v965
    %1221 = vmatprep.subr.mxu0 %v970
    %1222 = vmatpush1.msra.mxu0 %v969
    %1223 = vmatprep.subr.mxu0 %v974
    %1224 = vmatpush1.msra.mxu0 %v973
    %1225 = vmatprep.subr.mxu0 %v978
    %1226 = vmatpush1.msra.mxu0 %v977
    %1227 = vmatprep.subr.mxu0 %v982
    %1228 = vmatpush1.msra.mxu0 %v981
    %1229 = vmatprep.subr.mxu0 %v986
    %1230 = vmatpush1.msra.mxu0 %v985
    %1231 = vmatprep.subr.mxu0 %v990
    %1232 = vmatpush1.msra.mxu0 %v989
    %1233 = vmatprep.subr.mxu0 %v994
    %1234 = vmatpush1.msra.mxu0 %v993
    %1235 = vmatprep.subr.mxu0 %v998
    %1236 = vmatpush1.msra.mxu0 %v997
    %1237 = vmatprep.subr.mxu0 %v1002
    %1238 = vmatpush1.msra.mxu0 %v1001
    %1239 = vmatprep.subr.mxu0 %v1006
    %1240 = vmatpush1.msra.mxu0 %v1005
    %1241 = vmatprep.subr.mxu0 %v1010
    %1242 = vmatpush1.msra.mxu0 %v1009
    %1243 = vmatprep.subr.mxu0 %v1014
    %1244 = vmatpush1.msra.mxu0 %v1013
    %1245 = vmatprep.subr.mxu0 %v1018
    %1246 = vmatpush1.msra.mxu0 %v1017
    %1247 = vmatprep.subr.mxu0 %v1022
    %1248 = vmatpush1.msra.mxu0 %v1021
    %1249 = vmatprep.subr.mxu0 %v1026
    %1250 = vmatpush1.msra.mxu0 %v1025
    %1251 = vmatprep.subr.mxu0 %v1030
    %1252 = vmatpush1.msra.mxu0 %v1029
    %1253 = vmatprep.subr.mxu0 %v1034
    %1254 = vmatpush1.msra.mxu0 %v1033
    %1255 = vmatprep.subr.mxu0 %v1038
    %1256 = vmatpush1.msra.mxu0 %v1037
    %1257 = vmatprep.subr.mxu0 %v1042
    %1258 = vmatpush1.msra.mxu0 %v1041
    %1259 = vmatprep.subr.mxu0 %v1046
    %1260 = vmatpush1.msra.mxu0 %v1045
    %1261 = vmatprep.subr.mxu0 %v1050
    %1262 = vmatpush1.msra.mxu0 %v1049
    %1263 = vmatprep.subr.mxu0 %v1054
    %1264 = vmatpush1.msra.mxu0 %v1053
    %1265 = vmatprep.subr.mxu0 %v1058
    %1266 = vmatpush1.msra.mxu0 %v1057
    %1267 = vmatprep.subr.mxu0 %v1062
    %1268 = vmatpush1.msra.mxu0 %v1061
    %1269 = vmatprep.subr.mxu0 %v1066
    %1270 = vmatpush1.msra.mxu0 %v1065
    %1271 = vmatprep.subr.mxu0 %v1070
    %1272 = vmatpush1.msra.mxu0 %v1069
    %1273 = vmatprep.subr.mxu0 %v1074
    %1274 = vmatpush1.msra.mxu0 %v1073
    %1275 = vmatprep.subr.mxu0 %v1078
    %1276 = vmatpush1.msra.mxu0 %v1077
    %1277 = vmatprep.subr.mxu0 %v1082
    %1278 = vmatpush1.msra.mxu0 %v1081
    %1279 = vmatprep.subr.mxu0 %v1086
    %1280 = vmatpush1.msra.mxu0 %v1085
    %1281 = vmatprep.mubr.f32.mxu0 %v958
    %1282 = vmatmul.mubr.f32.gmra.mrb[0].mxu0 %v957
    %v1283 = vpop.f32.mrb[0].mxu0
    %v1284 = vadd.f32 0.0, %v1283
    %v1285 = vpop.f32.mrb[0].mxu0
    %v1286 = vadd.f32 0.0, %v1285
    %1287 = vdwg.mxu0
    %1288 = vmatprep.subr.mxu0 %v1090
    %1289 = vmatpush1.msra.mxu0 %v1089
    %1290 = vmatprep.subr.mxu0 %v1094
    %1291 = vmatpush1.msra.mxu0 %v1093
    %1292 = vmatprep.subr.mxu0 %v1098
    %1293 = vmatpush1.msra.mxu0 %v1097
    %1294 = vmatprep.subr.mxu0 %v1102
    %1295 = vmatpush1.msra.mxu0 %v1101
    %1296 = vmatprep.subr.mxu0 %v1106
    %1297 = vmatpush1.msra.mxu0 %v1105
    %1298 = vmatprep.subr.mxu0 %v1110
    %1299 = vmatpush1.msra.mxu0 %v1109
    %1300 = vmatprep.subr.mxu0 %v1114
    %1301 = vmatpush1.msra.mxu0 %v1113
    %1302 = vmatprep.subr.mxu0 %v1118
    %1303 = vmatpush1.msra.mxu0 %v1117
    %1304 = vmatprep.subr.mxu0 %v1122
    %1305 = vmatpush1.msra.mxu0 %v1121
    %1306 = vmatprep.subr.mxu0 %v1126
    %1307 = vmatpush1.msra.mxu0 %v1125
    %1308 = vmatprep.subr.mxu0 %v1130
    %1309 = vmatpush1.msra.mxu0 %v1129
    %1310 = vmatprep.subr.mxu0 %v1134
    %1311 = vmatpush1.msra.mxu0 %v1133
    %1312 = vmatprep.subr.mxu0 %v1138
    %1313 = vmatpush1.msra.mxu0 %v1137
    %1314 = vmatprep.subr.mxu0 %v1142
    %1315 = vmatpush1.msra.mxu0 %v1141
    %1316 = vmatprep.subr.mxu0 %v1146
    %1317 = vmatpush1.msra.mxu0 %v1145
    %1318 = vmatprep.subr.mxu0 %v1150
    %1319 = vmatpush1.msra.mxu0 %v1149
    %1320 = vmatprep.subr.mxu0 %v1154
    %1321 = vmatpush1.msra.mxu0 %v1153
    %1322 = vmatprep.subr.mxu0 %v1158
    %1323 = vmatpush1.msra.mxu0 %v1157
    %1324 = vmatprep.subr.mxu0 %v1162
    %1325 = vmatpush1.msra.mxu0 %v1161
    %1326 = vmatprep.subr.mxu0 %v1166
    %1327 = vmatpush1.msra.mxu0 %v1165
    %1328 = vmatprep.subr.mxu0 %v1170
    %1329 = vmatpush1.msra.mxu0 %v1169
    %1330 = vmatprep.subr.mxu0 %v1174
    %1331 = vmatpush1.msra.mxu0 %v1173
    %1332 = vmatprep.subr.mxu0 %v1178
    %1333 = vmatpush1.msra.mxu0 %v1177
    %1334 = vmatprep.subr.mxu0 %v1182
    %1335 = vmatpush1.msra.mxu0 %v1181
    %1336 = vmatprep.subr.mxu0 %v1186
    %1337 = vmatpush1.msra.mxu0 %v1185
    %1338 = vmatprep.subr.mxu0 %v1190
    %1339 = vmatpush1.msra.mxu0 %v1189
    %1340 = vmatprep.subr.mxu0 %v1194
    %1341 = vmatpush1.msra.mxu0 %v1193
    %1342 = vmatprep.subr.mxu0 %v1198
    %1343 = vmatpush1.msra.mxu0 %v1197
    %1344 = vmatprep.subr.mxu0 %v1202
    %1345 = vmatpush1.msra.mxu0 %v1201
    %1346 = vmatprep.subr.mxu0 %v1206
    %1347 = vmatpush1.msra.mxu0 %v1205
    %1348 = vmatprep.subr.mxu0 %v1210
    %1349 = vmatpush1.msra.mxu0 %v1209
    %1350 = vmatprep.subr.mxu0 %v1214
    %1351 = vmatpush1.msra.mxu0 %v1213
    %1352 = vmatprep.mubr.f32.mxu0 %v960
    %1353 = vmatmul.mubr.f32.gmra.mrb[0].mxu0 %v959
    %v1354 = vpop.f32.mrb[0].mxu0
    %v1355 = vadd.f32 %v1284, %v1354
    %v1356 = vpop.f32.mrb[0].mxu0
    %v1357 = vadd.f32 %v1286, %v1356
    %1358 = vdwg.mxu0
    %1359 = vmatprep.subr.mxu0 %v964
    %1360 = vmatpush1.msra.mxu0 %v963
    %1361 = vmatprep.subr.mxu0 %v968
    %1362 = vmatpush1.msra.mxu0 %v967
    %1363 = vmatprep.subr.mxu0 %v972
    %1364 = vmatpush1.msra.mxu0 %v971
    %1365 = vmatprep.subr.mxu0 %v976
    %1366 = vmatpush1.msra.mxu0 %v975
    %1367 = vmatprep.subr.mxu0 %v980
    %1368 = vmatpush1.msra.mxu0 %v979
    %1369 = vmatprep.subr.mxu0 %v984
    %1370 = vmatpush1.msra.mxu0 %v983
    %1371 = vmatprep.subr.mxu0 %v988
    %1372 = vmatpush1.msra.mxu0 %v987
    %1373 = vmatprep.subr.mxu0 %v992
    %1374 = vmatpush1.msra.mxu0 %v991
    %1375 = vmatprep.subr.mxu0 %v996
    %1376 = vmatpush1.msra.mxu0 %v995
    %1377 = vmatprep.subr.mxu0 %v1000
    %1378 = vmatpush1.msra.mxu0 %v999
    %1379 = vmatprep.subr.mxu0 %v1004
    %1380 = vmatpush1.msra.mxu0 %v1003
    %1381 = vmatprep.subr.mxu0 %v1008
    %1382 = vmatpush1.msra.mxu0 %v1007
    %1383 = vmatprep.subr.mxu0 %v1012
    %1384 = vmatpush1.msra.mxu0 %v1011
    %1385 = vmatprep.subr.mxu0 %v1016
    %1386 = vmatpush1.msra.mxu0 %v1015
    %1387 = vmatprep.subr.mxu0 %v1020
    %1388 = vmatpush1.msra.mxu0 %v1019
    %1389 = vmatprep.subr.mxu0 %v1024
    %1390 = vmatpush1.msra.mxu0 %v1023
    %1391 = vmatprep.subr.mxu0 %v1028
    %1392 = vmatpush1.msra.mxu0 %v1027
    %1393 = vmatprep.subr.mxu0 %v1032
    %1394 = vmatpush1.msra.mxu0 %v1031
    %1395 = vmatprep.subr.mxu0 %v1036
    %1396 = vmatpush1.msra.mxu0 %v1035
    %1397 = vmatprep.subr.mxu0 %v1040
    %1398 = vmatpush1.msra.mxu0 %v1039
    %1399 = vmatprep.subr.mxu0 %v1044
    %1400 = vmatpush1.msra.mxu0 %v1043
    %1401 = vmatprep.subr.mxu0 %v1048
    %1402 = vmatpush1.msra.mxu0 %v1047
    %1403 = vmatprep.subr.mxu0 %v1052
    %1404 = vmatpush1.msra.mxu0 %v1051
    %1405 = vmatprep.subr.mxu0 %v1056
    %1406 = vmatpush1.msra.mxu0 %v1055
    %1407 = vmatprep.subr.mxu0 %v1060
    %1408 = vmatpush1.msra.mxu0 %v1059
    %1409 = vmatprep.subr.mxu0 %v1064
    %1410 = vmatpush1.msra.mxu0 %v1063
    %1411 = vmatprep.subr.mxu0 %v1068
    %1412 = vmatpush1.msra.mxu0 %v1067
    %1413 = vmatprep.subr.mxu0 %v1072
    %1414 = vmatpush1.msra.mxu0 %v1071
    %1415 = vmatprep.subr.mxu0 %v1076
    %1416 = vmatpush1.msra.mxu0 %v1075
    %1417 = vmatprep.subr.mxu0 %v1080
    %1418 = vmatpush1.msra.mxu0 %v1079
    %1419 = vmatprep.subr.mxu0 %v1084
    %1420 = vmatpush1.msra.mxu0 %v1083
    %1421 = vmatprep.subr.mxu0 %v1088
    %1422 = vmatpush1.msra.mxu0 %v1087
    %1423 = vmatprep.mubr.f32.mxu0 %v958
    %1424 = vmatmul.mubr.f32.gmra.mrb[0].mxu0 %v957
    %v1425 = vpop.f32.mrb[0].mxu0
    %v1426 = vadd.f32 0.0, %v1425
    %v1427 = vpop.f32.mrb[0].mxu0
    %v1428 = vadd.f32 0.0, %v1427
    %1429 = vdwg.mxu0
    %1430 = vmatprep.subr.mxu0 %v1092
    %1431 = vmatpush1.msra.mxu0 %v1091
    %1432 = vmatprep.subr.mxu0 %v1096
    %1433 = vmatpush1.msra.mxu0 %v1095
    %1434 = vmatprep.subr.mxu0 %v1100
    %1435 = vmatpush1.msra.mxu0 %v1099
    %1436 = vmatprep.subr.mxu0 %v1104
    %1437 = vmatpush1.msra.mxu0 %v1103
    %1438 = vmatprep.subr.mxu0 %v1108
    %1439 = vmatpush1.msra.mxu0 %v1107
    %1440 = vmatprep.subr.mxu0 %v1112
    %1441 = vmatpush1.msra.mxu0 %v1111
    %1442 = vmatprep.subr.mxu0 %v1116
    %1443 = vmatpush1.msra.mxu0 %v1115
    %1444 = vmatprep.subr.mxu0 %v1120
    %1445 = vmatpush1.msra.mxu0 %v1119
    %1446 = vmatprep.subr.mxu0 %v1124
    %1447 = vmatpush1.msra.mxu0 %v1123
    %1448 = vmatprep.subr.mxu0 %v1128
    %1449 = vmatpush1.msra.mxu0 %v1127
    %1450 = vmatprep.subr.mxu0 %v1132
    %1451 = vmatpush1.msra.mxu0 %v1131
    %1452 = vmatprep.subr.mxu0 %v1136
    %1453 = vmatpush1.msra.mxu0 %v1135
    %1454 = vmatprep.subr.mxu0 %v1140
    %1455 = vmatpush1.msra.mxu0 %v1139
    %1456 = vmatprep.subr.mxu0 %v1144
    %1457 = vmatpush1.msra.mxu0 %v1143
    %1458 = vmatprep.subr.mxu0 %v1148
    %1459 = vmatpush1.msra.mxu0 %v1147
    %1460 = vmatprep.subr.mxu0 %v1152
    %1461 = vmatpush1.msra.mxu0 %v1151
    %1462 = vmatprep.subr.mxu0 %v1156
    %1463 = vmatpush1.msra.mxu0 %v1155
    %1464 = vmatprep.subr.mxu0 %v1160
    %1465 = vmatpush1.msra.mxu0 %v1159
    %1466 = vmatprep.subr.mxu0 %v1164
    %1467 = vmatpush1.msra.mxu0 %v1163
    %1468 = vmatprep.subr.mxu0 %v1168
    %1469 = vmatpush1.msra.mxu0 %v1167
    %1470 = vmatprep.subr.mxu0 %v1172
    %1471 = vmatpush1.msra.mxu0 %v1171
    %1472 = vmatprep.subr.mxu0 %v1176
    %1473 = vmatpush1.msra.mxu0 %v1175
    %1474 = vmatprep.subr.mxu0 %v1180
    %1475 = vmatpush1.msra.mxu0 %v1179
    %1476 = vmatprep.subr.mxu0 %v1184
    %1477 = vmatpush1.msra.mxu0 %v1183
    %1478 = vmatprep.subr.mxu0 %v1188
    %1479 = vmatpush1.msra.mxu0 %v1187
    %1480 = vmatprep.subr.mxu0 %v1192
    %1481 = vmatpush1.msra.mxu0 %v1191
    %1482 = vmatprep.subr.mxu0 %v1196
    %1483 = vmatpush1.msra.mxu0 %v1195
    %1484 = vmatprep.subr.mxu0 %v1200
    %1485 = vmatpush1.msra.mxu0 %v1199
    %1486 = vmatprep.subr.mxu0 %v1204
    %1487 = vmatpush1.msra.mxu0 %v1203
    %1488 = vmatprep.subr.mxu0 %v1208
    %1489 = vmatpush1.msra.mxu0 %v1207
    %1490 = vmatprep.subr.mxu0 %v1212
    %1491 = vmatpush1.msra.mxu0 %v1211
    %1492 = vmatprep.subr.mxu0 %v1216
    %1493 = vmatpush1.msra.mxu0 %v1215
    %1494 = vmatprep.mubr.f32.mxu0 %v960
    %1495 = vmatmul.mubr.f32.gmra.mrb[0].mxu0 %v959
    %v1496 = vpop.f32.mrb[0].mxu0
    %v1497 = vadd.f32 %v1426, %v1496
    %v1498 = vpop.f32.mrb[0].mxu0
    %v1499 = vadd.f32 %v1428, %v1498
    %1500 = vdwg.mxu0
    %v1501 = vadd.f32 %v1355, %v1357
    %v1502 = vadd.f32 %v1501, %v1497
    %v1503 = vadd.f32 %v1502, %v1499
    %v1504 = vmul.f32 %v1503, 0.25
    %1505 = vst [vmem:[#allocation13] sm:$0xff] %v1504
    // Predicated region
    $region42: #{tpu_custom_call.1} parent=1 // pred_check
      _
    $region43: #{tpu_custom_call.1} parent=1 // pred_check_branch
      %1507 = sbr.rel (0) target = $region45
    $region44: #{tpu_custom_call.1} parent=1 // pred_region
      %s1509 = ssub.s32 128, 128
      %1510 = vsyncadd [#allocation6], %s1509
      %s1512 = sshll.u32 [#allocation13], 4
      %s1513 = int_to_ptr.vmem [resolvable:$true] %s1512
      %1515 = dma.vmem_to_hbm [thread:$0]  %s1513, 128, %s5, [#allocation6]
    $region45: #{tpu_custom_call.1} parent=1 // pred_fallthru
      _
    // Predicated region
    $region46: #{tpu_custom_call.1} parent=1 // pred_check
      _
    $region47: #{tpu_custom_call.1} parent=1 // pred_check_branch
      %1517 = sbr.rel (0) target = $region49
    $region48: #{tpu_custom_call.1} parent=1 // pred_region
      %1518 = dma.done [#allocation6], 128
    $region49: #{tpu_custom_call.1} parent=1 // pred_fallthru
      _
    %1519 = vsyncpa [#allocation5], 1
    %1520 = vsyncpa [#allocation8], 1
    %1521 = vsyncpa [#allocation11], 1
    %1522 = vsyncpa [#allocation6], 1

</llo_original>
